<compile_context>
chip_gen: v7x
topology: tpu7x:2x2x1
jax: 0.10.0
libtpu: 0.0.40
codegen_flags: <defaults>
</compile_context>

<pallas_src>
import jax
import jax.numpy as jnp
from jax.experimental import pallas as pl
from jax.experimental.pallas import tpu as pltpu


def attention_layer_kernel(
    hx_ref,      # (bb, H + D)   [state | x]
    mem_ref,     # (bt, bb, H)   memory tile, native (T, B, H) layout
    w_gru_ref,   # (H + D, 4H)   fused GRU weight  [r | z | n_x | n_h]
    b_gru_ref,   # (1, 4H)
    w_q_ref,     # (H, H)        query weight, pre-transposed
    b_q_ref,     # (1, H)
    w_v_ref,     # (1, H)        value weight
    out_ref,     # (bb, 2H)      [h_new | context]
    q_sc,        # (bb, H)       query scratch
    m_sc,        # (bb, 1)       online-softmax running max
    l_sc,        # (bb, 1)       online-softmax running sum
    acc_sc,      # (bb, H)       unnormalized context accumulator
):
    H = q_sc.shape[-1]
    t_idx = pl.program_id(1)
    n_t = pl.num_programs(1)

    # ---- first T-tile of each batch tile: GRU cell + query + accumulator init
    @pl.when(t_idx == 0)
    def _init():
        hx = hx_ref[...].astype(jnp.float32)                 # (bb, H + D)
        h_prev = hx[:, 0:H]                                  # state part (lane-aligned)
        # single fused MXU pass: g = [h|x] @ W_gru + b_gru -> (bb, 4H)
        g = jnp.dot(hx, w_gru_ref[...],
                    preferred_element_type=jnp.float32) + b_gru_ref[...]
        r = jax.nn.sigmoid(g[:, 0:H])
        z = jax.nn.sigmoid(g[:, H:2 * H])
        n = jnp.tanh(g[:, 2 * H:3 * H] + r * g[:, 3 * H:4 * H])
        h_new = (1.0 - z) * n + z * h_prev                   # (bb, H)
        out_ref[:, 0:H] = h_new.astype(out_ref.dtype)

        q_sc[...] = jnp.dot(h_new, w_q_ref[...],
                            preferred_element_type=jnp.float32) + b_q_ref[...]

        m_sc[...] = jnp.full(m_sc.shape, -jnp.inf, jnp.float32)
        l_sc[...] = jnp.zeros(l_sc.shape, jnp.float32)
        acc_sc[...] = jnp.zeros(acc_sc.shape, jnp.float32)

    # ---- TanhAttention scores for this memory tile (VPU + lane-reduce on XLU;
    #      the kernel is HBM-bound so these slots are otherwise idle)
    mem = mem_ref[...].astype(jnp.float32)                   # (bt, bb, H)
    t_act = jnp.tanh(q_sc[...] + mem)                        # (bt, bb, H), q broadcast over t
    # scores: reduce H on the lane axis; value-bias b_v dropped (softmax is
    # shift-invariant, so adding a constant to every score is an exact no-op).
    s = jnp.sum(t_act * w_v_ref[...], axis=-1, keepdims=True)   # (bt, bb, 1)

    # ---- online softmax over the T grid axis (t is the vreg-stacked axis,
    #      so the per-tile max / sum over t are cheap elementwise VPU reductions)
    m_prev = m_sc[...]                                       # (bb, 1)
    m_new = jnp.maximum(m_prev, jnp.max(s, axis=0))          # (bb, 1)
    alpha = jnp.exp(m_prev - m_new)                          # (bb, 1)
    p = jnp.exp(s - m_new)                                   # (bt, bb, 1)
    l_sc[...] = alpha * l_sc[...] + jnp.sum(p, axis=0)       # (bb, 1)
    acc_sc[...] = alpha * acc_sc[...] + jnp.sum(p * mem, axis=0)   # (bb, H)
    m_sc[...] = m_new

    # ---- last T-tile: normalize and emit the context half of the output
    @pl.when(t_idx == n_t - 1)
    def _finalize():
        # approx=True would use the otherwise-idle EUP slot; kept exact for 1e-5 tol.
        ctx = acc_sc[...] * pl.reciprocal(l_sc[...], approx=False)   # (bb, H)
        out_ref[:, H:2 * H] = ctx.astype(out_ref.dtype)


def prepare_params(params, input_size, hidden_size):
    """One-time parameter prep: pre-transpose + fuse GRU weights (host side)."""
    H, D = hidden_size, input_size
    w_ih, w_hh = params["w_ih"], params["w_hh"]       # (3H, D), (3H, H)
    b_ih, b_hh = params["b_ih"], params["b_hh"]       # (1, 3H)

    # fused weight for hx = [state | x] : columns [r | z | n_x | n_h]
    w_gru = jnp.zeros((H + D, 4 * H), jnp.float32)
    w_gru = w_gru.at[:H, 0:H].set(w_hh[0:H].T)                  # r (h rows)
    w_gru = w_gru.at[H:, 0:H].set(w_ih[0:H].T)                  # r (x rows)
    w_gru = w_gru.at[:H, H:2 * H].set(w_hh[H:2 * H].T)          # z (h rows)
    w_gru = w_gru.at[H:, H:2 * H].set(w_ih[H:2 * H].T)          # z (x rows)
    w_gru = w_gru.at[H:, 2 * H:3 * H].set(w_ih[2 * H:3 * H].T)  # n_x (x only)
    w_gru = w_gru.at[:H, 3 * H:4 * H].set(w_hh[2 * H:3 * H].T)  # n_h (h only)
    b_gru = jnp.concatenate(
        [b_ih[:, 0:H] + b_hh[:, 0:H],
         b_ih[:, H:2 * H] + b_hh[:, H:2 * H],
         b_ih[:, 2 * H:3 * H],
         b_hh[:, 2 * H:3 * H]], axis=-1)                        # (1, 4H)

    return {
        "w_gru": w_gru,
        "b_gru": b_gru,
        "w_q_t": params["w_q"].T,          # (H, H) pre-transposed
        "b_q": params["b_q"],              # (1, H)
        "w_v": params["w_v"],              # (1, H)
        # b_v intentionally not needed by the kernel (softmax shift-invariance).
    }


def _choose_block(dim, target):
    """Largest multiple-of-8 divisor of `dim` that is <= target (or dim itself)."""
    if dim <= target:
        return dim
    b = (target // 8) * 8
    while b >= 8:
        if dim % b == 0:
            return b
        b -= 8
    return dim


def _vmem_capacity_bytes():
    """Per-generation VMEM capacity (v5e/v6e: 128 MiB, v7x: 64 MiB)."""
    try:
        cap = int(getattr(pltpu.get_tpu_info(), "vmem_capacity_bytes"))
        if cap > 0:
            return cap
    except Exception:
        pass
    return 64 * 1024 * 1024          # conservative fallback (v7x per-TC)


def _auto_block_t(T, bb, H, D, vmem_budget_bytes):
    """Largest T tile whose double-buffered footprint fits the VMEM budget."""
    f32 = 4
    fixed = 2 * ((H + D) * 4 * H + 4 * H + H * H + 2 * H) * f32   # weights (double-buffered)
    fixed += 2 * bb * (H + D) * f32                               # hx input
    fixed += 2 * bb * 2 * H * f32                                 # packed output
    fixed += (2 * bb * H + 2 * bb) * f32                          # scratch
    per_t = 2 * bb * H * f32                                      # mem tile per T row (x2 buffers)
    avail = vmem_budget_bytes - fixed
    bt_cap = max(8, avail // per_t) if avail > 0 else 8
    return _choose_block(T, int(min(bt_cap, 4096)))


def attention_layer(x, state, memory, prep, *, block_b=None, block_t=None):
    """x: (B, D_in), state: (B, H), memory: (T, B, H). Returns ((B,1,H), (B,1,H))."""
    B, H = state.shape
    D = x.shape[-1]
    T = memory.shape[0]

    hx = jnp.concatenate([state, x], axis=-1)           # (B, H + D), state first

    vmem_cap = _vmem_capacity_bytes()
    vmem_limit = int(min(vmem_cap, 128 * 1024 * 1024) * 3 // 4)   # raise scoped default

    # Batch tile: large (MXU rows / HBM roofline), but keep >= 2 tiles when
    # B > 8 so the "parallel" axis can shard across both v7x TensorCores.
    if block_b is not None:
        bb = block_b
    else:
        target_b = max(8, min(256, B // 2)) if B > 8 else B
        bb = _choose_block(B, target_b)

    # T tile: sized against this generation's VMEM (double-buffered by Pallas).
    if block_t is not None:
        bt = block_t
    else:
        bt = _auto_block_t(T, bb, H, D, int(vmem_limit * 0.9))

    # TODO(synk): ragged (non-divisible) T or B would need a masked last tile
    # (pl.BoundedSlice) instead of these asserts.
    assert B % bb == 0 and T % bt == 0
    assert bb == B or bb % 8 == 0
    assert bt == T or bt % 8 == 0

    out = pl.pallas_call(
        attention_layer_kernel,
        out_shape=jax.ShapeDtypeStruct((B, 2 * H), x.dtype),
        grid_spec=pltpu.PrefetchScalarGridSpec(
            num_scalar_prefetch=0,
            grid=(B // bb, T // bt),
            in_specs=[
                pl.BlockSpec((bb, H + D), lambda b, t: (b, 0)),      # hx
                pl.BlockSpec((bt, bb, H), lambda b, t: (t, b, 0)),   # memory, native (T,B,H)
                pl.BlockSpec((H + D, 4 * H), lambda b, t: (0, 0)),   # w_gru
                pl.BlockSpec((1, 4 * H), lambda b, t: (0, 0)),       # b_gru
                pl.BlockSpec((H, H), lambda b, t: (0, 0)),           # w_q (pre-T)
                pl.BlockSpec((1, H), lambda b, t: (0, 0)),           # b_q
                pl.BlockSpec((1, H), lambda b, t: (0, 0)),           # w_v
            ],
            out_specs=pl.BlockSpec((bb, 2 * H), lambda b, t: (b, 0)),
            scratch_shapes=[
                pltpu.VMEM((bb, H), jnp.float32),   # q
                pltpu.VMEM((bb, 1), jnp.float32),   # running max
                pltpu.VMEM((bb, 1), jnp.float32),   # running sum
                pltpu.VMEM((bb, H), jnp.float32),   # context accumulator
            ],
        ),
        compiler_params=pltpu.CompilerParams(
            dimension_semantics=("parallel", "arbitrary"),
            vmem_limit_bytes=vmem_limit),
    )(hx, memory,
      prep["w_gru"], prep["b_gru"], prep["w_q_t"], prep["b_q"], prep["w_v"])

    rnn_out = out[:, :H]
    ctx = out[:, H:]
    return rnn_out[:, None, :], ctx[:, None, :]


def reference(x, state, memory, params):
    """Pure-JAX reference mirroring the PyTorch forward."""
    H = state.shape[-1]
    mem = jnp.transpose(memory, (1, 0, 2))
    gx = x @ params["w_ih"].T + params["b_ih"]
    gh = state @ params["w_hh"].T + params["b_hh"]
    r = jax.nn.sigmoid(gx[:, :H] + gh[:, :H])
    z = jax.nn.sigmoid(gx[:, H:2 * H] + gh[:, H:2 * H])
    n = jnp.tanh(gx[:, 2 * H:] + r * gh[:, 2 * H:])
    h_new = (1.0 - z) * n + z * state
    q = h_new @ params["w_q"].T + params["b_q"]
    align = jnp.tanh(q[:, None, :] + mem) @ params["w_v"][0] + params["b_v"][0, 0]
    attn = jax.nn.softmax(align, axis=-1)
    ctx = jnp.einsum("bt,bth->bh", attn, mem)
    return h_new[:, None, :], ctx[:, None, :]


def make_params(key, input_size, hidden_size):
    ks = jax.random.split(key, 8)
    s = 0.1
    return {
        "w_ih": s * jax.random.normal(ks[0], (3 * hidden_size, input_size), jnp.float32),
        "b_ih": s * jax.random.normal(ks[1], (1, 3 * hidden_size), jnp.float32),
        "w_hh": s * jax.random.normal(ks[2], (3 * hidden_size, hidden_size), jnp.float32),
        "b_hh": s * jax.random.normal(ks[3], (1, 3 * hidden_size), jnp.float32),
        "w_q":  s * jax.random.normal(ks[4], (hidden_size, hidden_size), jnp.float32),
        "b_q":  s * jax.random.normal(ks[5], (1, hidden_size), jnp.float32),
        "w_v":  s * jax.random.normal(ks[6], (1, hidden_size), jnp.float32),
        "b_v":  s * jax.random.normal(ks[7], (1, 1), jnp.float32),
    }


if __name__ == "__main__":
    B, T, D_IN, H = 16, 32, 16, 32
    key = jax.random.PRNGKey(0)
    k_x, k_h, k_m, k_p = jax.random.split(key, 4)

    x = jax.random.normal(k_x, (B, D_IN), jnp.float32)
    state = jax.random.normal(k_h, (B, H), jnp.float32)
    memory = jax.random.normal(k_m, (T, B, H), jnp.float32)   # PyTorch (T, B, H) layout
    params = make_params(k_p, D_IN, H)
    prep = prepare_params(params, D_IN, H)

    ref_rnn, ref_attn = reference(x, state, memory, params)

    # 1) auto tiling: >=2 batch tiles (megacore-parallel), VMEM-sized T tile.
    rnn_out, attention = attention_layer(x, state, memory, prep)
    jax.block_until_ready((rnn_out, attention))
    assert rnn_out.shape == (B, 1, H) and attention.shape == (B, 1, H)
    assert jnp.allclose(rnn_out, ref_rnn, atol=1e-5, rtol=1e-5)
    assert jnp.allclose(attention, ref_attn, atol=1e-5, rtol=1e-5)

    # 2) explicit small tiles: exercises the multi-step online softmax over T
    #    and multiple batch tiles with the native (T, B, H) memory layout.
    rnn_out2, attention2 = attention_layer(x, state, memory, prep, block_b=8, block_t=8)
    jax.block_until_ready((rnn_out2, attention2))
    assert jnp.allclose(rnn_out2, ref_rnn, atol=1e-5, rtol=1e-5)
    assert jnp.allclose(attention2, ref_attn, atol=1e-5, rtol=1e-5)

    print("KERNEL_OK")
</pallas_src>

<mosaic_0001>
module attributes {stable_mosaic.version = 11 : i64} {
  func.func @attention_layer_kernel(%arg0: i32, %arg1: i32, %arg2: memref<8x48xf32, #tpu.memory_space<vmem>>, %arg3: memref<32x8x32xf32, #tpu.memory_space<vmem>>, %arg4: memref<48x128xf32, #tpu.memory_space<vmem>>, %arg5: memref<1x128xf32, #tpu.memory_space<vmem>>, %arg6: memref<32x32xf32, #tpu.memory_space<vmem>>, %arg7: memref<1x32xf32, #tpu.memory_space<vmem>>, %arg8: memref<1x32xf32, #tpu.memory_space<vmem>>, %arg9: memref<8x64xf32, #tpu.memory_space<vmem>>, %arg10: memref<8x32xf32, #tpu.memory_space<vmem>>, %arg11: memref<8x1xf32, #tpu.memory_space<vmem>>, %arg12: memref<8x1xf32, #tpu.memory_space<vmem>>, %arg13: memref<8x32xf32, #tpu.memory_space<vmem>>) attributes {dimension_semantics = [#tpu.dimension_semantics<parallel>, #tpu.dimension_semantics<arbitrary>], iteration_bounds = array<i64: 2, 1>, scalar_prefetch = 0 : i64, scratch_operands = 4 : i64, tpu.core_type = #tpu.core_type<tc>, window_params = [{transform_indices = @transform_0, window_bounds = array<i64: 8, 48>}, {transform_indices = @transform_1, window_bounds = array<i64: 32, 8, 32>}, {pipeline_mode = #tpu.pipeline_mode<synchronous>, transform_indices = @transform_2, window_bounds = array<i64: 48, 128>}, {pipeline_mode = #tpu.pipeline_mode<synchronous>, transform_indices = @transform_3, window_bounds = array<i64: 1, 128>}, {pipeline_mode = #tpu.pipeline_mode<synchronous>, transform_indices = @transform_4, window_bounds = array<i64: 32, 32>}, {pipeline_mode = #tpu.pipeline_mode<synchronous>, transform_indices = @transform_5, window_bounds = array<i64: 1, 32>}, {pipeline_mode = #tpu.pipeline_mode<synchronous>, transform_indices = @transform_6, window_bounds = array<i64: 1, 32>}, {transform_indices = @transform_7, window_bounds = array<i64: 8, 64>}]} {
    %c0_i32 = arith.constant 0 : i32
    %0 = arith.cmpi eq, %arg1, %c0_i32 : i32
    %1 = arith.extui %0 : i1 to i32
    %c0_i32_0 = arith.constant 0 : i32
    %2 = arith.cmpi ne, %1, %c0_i32_0 : i32
    scf.if %2 {
      %c0_24 = arith.constant 0 : index
      %c0_25 = arith.constant 0 : index
      %41 = vector.load %arg2[%c0_24, %c0_25] : memref<8x48xf32, #tpu.memory_space<vmem>>, vector<8x48xf32>
      %42 = vector.extract_strided_slice %41 {offsets = [0, 0], sizes = [8, 32], strides = [1, 1]} : vector<8x48xf32> to vector<8x32xf32>
      %c0_26 = arith.constant 0 : index
      %c0_27 = arith.constant 0 : index
      %43 = vector.load %arg4[%c0_26, %c0_27] : memref<48x128xf32, #tpu.memory_space<vmem>>, vector<48x128xf32>
      %cst_28 = arith.constant dense<0.000000e+00> : vector<8x128xf32>
      %44 = tpu.matmul %41, %43, %cst_28 {dimension_numbers = #tpu.dot_dimension_numbers<[1], [0], [0], [1], [0, 0, 1, 1], [], []>} : vector<8x48xf32>, vector<48x128xf32>, vector<8x128xf32> -> vector<8x128xf32>
      %c0_29 = arith.constant 0 : index
      %c0_30 = arith.constant 0 : index
      %45 = vector.load %arg5[%c0_29, %c0_30] : memref<1x128xf32, #tpu.memory_space<vmem>>, vector<1x128xf32>
      %46 = vector.broadcast %45 : vector<1x128xf32> to vector<8x128xf32>
      %47 = arith.addf %44, %46 : vector<8x128xf32>
      %48 = vector.extract_strided_slice %47 {offsets = [0, 0], sizes = [8, 32], strides = [1, 1]} : vector<8x128xf32> to vector<8x32xf32>
      %49 = arith.negf %48 : vector<8x32xf32>
      %50 = math.exp %49 : vector<8x32xf32>
      %cst_31 = arith.constant 1.000000e+00 : f32
      %51 = vector.broadcast %cst_31 : f32 to vector<8x32xf32>
      %52 = arith.addf %51, %50 : vector<8x32xf32>
      %53 = arith.divf %51, %52 : vector<8x32xf32>
      %54 = vector.extract_strided_slice %47 {offsets = [0, 32], sizes = [8, 32], strides = [1, 1]} : vector<8x128xf32> to vector<8x32xf32>
      %55 = arith.negf %54 : vector<8x32xf32>
      %56 = math.exp %55 : vector<8x32xf32>
      %cst_32 = arith.constant 1.000000e+00 : f32
      %57 = vector.broadcast %cst_32 : f32 to vector<8x32xf32>
      %58 = arith.addf %57, %56 : vector<8x32xf32>
      %59 = arith.divf %57, %58 : vector<8x32xf32>
      %60 = vector.extract_strided_slice %47 {offsets = [0, 64], sizes = [8, 32], strides = [1, 1]} : vector<8x128xf32> to vector<8x32xf32>
      %61 = vector.extract_strided_slice %47 {offsets = [0, 96], sizes = [8, 32], strides = [1, 1]} : vector<8x128xf32> to vector<8x32xf32>
      %62 = arith.mulf %53, %61 : vector<8x32xf32>
      %63 = arith.addf %60, %62 : vector<8x32xf32>
      %64 = math.tanh %63 : vector<8x32xf32>
      %cst_33 = arith.constant 1.000000e+00 : f32
      %65 = vector.broadcast %cst_33 : f32 to vector<8x32xf32>
      %66 = arith.subf %65, %59 : vector<8x32xf32>
      %67 = arith.mulf %66, %64 : vector<8x32xf32>
      %68 = arith.mulf %59, %42 : vector<8x32xf32>
      %69 = arith.addf %67, %68 : vector<8x32xf32>
      %c0_34 = arith.constant 0 : index
      %c0_35 = arith.constant 0 : index
      %70 = vector.load %arg9[%c0_34, %c0_35] : memref<8x64xf32, #tpu.memory_space<vmem>>, vector<8x32xf32>
      tpu.vector_store %arg9[%c0_34, %c0_35], %69 {strides = array<i32>} : memref<8x64xf32, #tpu.memory_space<vmem>>, vector<8x32xf32>,
      %c0_36 = arith.constant 0 : index
      %c0_37 = arith.constant 0 : index
      %71 = vector.load %arg6[%c0_36, %c0_37] : memref<32x32xf32, #tpu.memory_space<vmem>>, vector<32x32xf32>
      %cst_38 = arith.constant dense<0.000000e+00> : vector<8x32xf32>
      %72 = tpu.matmul %69, %71, %cst_38 {dimension_numbers = #tpu.dot_dimension_numbers<[1], [0], [0], [1], [0, 0, 1, 1], [], []>} : vector<8x32xf32>, vector<32x32xf32>, vector<8x32xf32> -> vector<8x32xf32>
      %c0_39 = arith.constant 0 : index
      %c0_40 = arith.constant 0 : index
      %73 = vector.load %arg7[%c0_39, %c0_40] : memref<1x32xf32, #tpu.memory_space<vmem>>, vector<1x32xf32>
      %74 = vector.broadcast %73 : vector<1x32xf32> to vector<8x32xf32>
      %75 = arith.addf %72, %74 : vector<8x32xf32>
      %c0_41 = arith.constant 0 : index
      %c0_42 = arith.constant 0 : index
      %76 = vector.load %arg10[%c0_41, %c0_42] : memref<8x32xf32, #tpu.memory_space<vmem>>, vector<8x32xf32>
      tpu.vector_store %arg10[%c0_41, %c0_42], %75 {strides = array<i32>} : memref<8x32xf32, #tpu.memory_space<vmem>>, vector<8x32xf32>,
      %cst_43 = arith.constant 0xFF800000 : f32
      %77 = vector.broadcast %cst_43 : f32 to vector<8x1xf32>
      %c0_44 = arith.constant 0 : index
      %c0_45 = arith.constant 0 : index
      %78 = vector.load %arg11[%c0_44, %c0_45] : memref<8x1xf32, #tpu.memory_space<vmem>>, vector<8x1xf32>
      tpu.vector_store %arg11[%c0_44, %c0_45], %77 {strides = array<i32>} : memref<8x1xf32, #tpu.memory_space<vmem>>, vector<8x1xf32>,
      %cst_46 = arith.constant 0.000000e+00 : f32
      %79 = vector.broadcast %cst_46 : f32 to vector<8x1xf32>
      %c0_47 = arith.constant 0 : index
      %c0_48 = arith.constant 0 : index
      %80 = vector.load %arg12[%c0_47, %c0_48] : memref<8x1xf32, #tpu.memory_space<vmem>>, vector<8x1xf32>
      tpu.vector_store %arg12[%c0_47, %c0_48], %79 {strides = array<i32>} : memref<8x1xf32, #tpu.memory_space<vmem>>, vector<8x1xf32>,
      %cst_49 = arith.constant 0.000000e+00 : f32
      %81 = vector.broadcast %cst_49 : f32 to vector<8x32xf32>
      %c0_50 = arith.constant 0 : index
      %c0_51 = arith.constant 0 : index
      %82 = vector.load %arg13[%c0_50, %c0_51] : memref<8x32xf32, #tpu.memory_space<vmem>>, vector<8x32xf32>
      tpu.vector_store %arg13[%c0_50, %c0_51], %81 {strides = array<i32>} : memref<8x32xf32, #tpu.memory_space<vmem>>, vector<8x32xf32>,
    } else {
    }
    %c0 = arith.constant 0 : index
    %c0_1 = arith.constant 0 : index
    %c0_2 = arith.constant 0 : index
    %3 = vector.load %arg3[%c0, %c0_1, %c0_2] : memref<32x8x32xf32, #tpu.memory_space<vmem>>, vector<32x8x32xf32>
    %c0_3 = arith.constant 0 : index
    %c0_4 = arith.constant 0 : index
    %4 = vector.load %arg10[%c0_3, %c0_4] : memref<8x32xf32, #tpu.memory_space<vmem>>, vector<8x32xf32>
    %5 = vector.shape_cast %4 : vector<8x32xf32> to vector<1x8x32xf32>
    %6 = vector.broadcast %5 : vector<1x8x32xf32> to vector<32x8x32xf32>
    %7 = arith.addf %6, %3 : vector<32x8x32xf32>
    %8 = math.tanh %7 : vector<32x8x32xf32>
    %c0_5 = arith.constant 0 : index
    %c0_6 = arith.constant 0 : index
    %9 = vector.load %arg8[%c0_5, %c0_6] : memref<1x32xf32, #tpu.memory_space<vmem>>, vector<1x32xf32>
    %10 = vector.shape_cast %9 : vector<1x32xf32> to vector<1x1x32xf32>
    %11 = vector.broadcast %10 : vector<1x1x32xf32> to vector<32x8x32xf32>
    %12 = arith.mulf %8, %11 : vector<32x8x32xf32>
    %cst = arith.constant dense<0.000000e+00> : vector<32x8xf32>
    %13 = vector.multi_reduction <add>, %12, %cst [2] : vector<32x8x32xf32> to vector<32x8xf32>
    %14 = vector.shape_cast %13 : vector<32x8xf32> to vector<32x8x1xf32>
    %c0_7 = arith.constant 0 : index
    %c0_8 = arith.constant 0 : index
    %15 = vector.load %arg11[%c0_7, %c0_8] : memref<8x1xf32, #tpu.memory_space<vmem>>, vector<8x1xf32>
    %cst_9 = arith.constant dense<0xFF800000> : vector<8x1xf32>
    %16 = vector.multi_reduction <maximumf>, %14, %cst_9 [0] : vector<32x8x1xf32> to vector<8x1xf32>
    %17 = arith.maximumf %15, %16 : vector<8x1xf32>
    %18 = arith.subf %15, %17 : vector<8x1xf32>
    %19 = math.exp %18 : vector<8x1xf32>
    %20 = vector.shape_cast %17 : vector<8x1xf32> to vector<1x8x1xf32>
    %21 = vector.broadcast %20 : vector<1x8x1xf32> to vector<32x8x1xf32>
    %22 = arith.subf %14, %21 : vector<32x8x1xf32>
    %23 = math.exp %22 : vector<32x8x1xf32>
    %c0_10 = arith.constant 0 : index
    %c0_11 = arith.constant 0 : index
    %24 = vector.load %arg12[%c0_10, %c0_11] : memref<8x1xf32, #tpu.memory_space<vmem>>, vector<8x1xf32>
    %25 = arith.mulf %19, %24 : vector<8x1xf32>
    %cst_12 = arith.constant dense<0.000000e+00> : vector<8x1xf32>
    %26 = vector.multi_reduction <add>, %23, %cst_12 [0] : vector<32x8x1xf32> to vector<8x1xf32>
    %27 = arith.addf %25, %26 : vector<8x1xf32>
    %c0_13 = arith.constant 0 : index
    %c0_14 = arith.constant 0 : index
    %28 = vector.load %arg12[%c0_13, %c0_14] : memref<8x1xf32, #tpu.memory_space<vmem>>, vector<8x1xf32>
    tpu.vector_store %arg12[%c0_13, %c0_14], %27 {strides = array<i32>} : memref<8x1xf32, #tpu.memory_space<vmem>>, vector<8x1xf32>,
    %c0_15 = arith.constant 0 : index
    %c0_16 = arith.constant 0 : index
    %29 = vector.load %arg13[%c0_15, %c0_16] : memref<8x32xf32, #tpu.memory_space<vmem>>, vector<8x32xf32>
    %30 = vector.broadcast %19 : vector<8x1xf32> to vector<8x32xf32>
    %31 = arith.mulf %30, %29 : vector<8x32xf32>
    %32 = vector.broadcast %23 : vector<32x8x1xf32> to vector<32x8x32xf32>
    %33 = arith.mulf %32, %3 : vector<32x8x32xf32>
    %cst_17 = arith.constant dense<0.000000e+00> : vector<8x32xf32>
    %34 = vector.multi_reduction <add>, %33, %cst_17 [0] : vector<32x8x32xf32> to vector<8x32xf32>
    %35 = arith.addf %31, %34 : vector<8x32xf32>
    %c0_18 = arith.constant 0 : index
    %c0_19 = arith.constant 0 : index
    %36 = vector.load %arg13[%c0_18, %c0_19] : memref<8x32xf32, #tpu.memory_space<vmem>>, vector<8x32xf32>
    tpu.vector_store %arg13[%c0_18, %c0_19], %35 {strides = array<i32>} : memref<8x32xf32, #tpu.memory_space<vmem>>, vector<8x32xf32>,
    %c0_20 = arith.constant 0 : index
    %c0_21 = arith.constant 0 : index
    %37 = vector.load %arg11[%c0_20, %c0_21] : memref<8x1xf32, #tpu.memory_space<vmem>>, vector<8x1xf32>
    tpu.vector_store %arg11[%c0_20, %c0_21], %17 {strides = array<i32>} : memref<8x1xf32, #tpu.memory_space<vmem>>, vector<8x1xf32>,
    %c0_i32_22 = arith.constant 0 : i32
    %38 = arith.cmpi eq, %arg1, %c0_i32_22 : i32
    %39 = arith.extui %38 : i1 to i32
    %c0_i32_23 = arith.constant 0 : i32
    %40 = arith.cmpi ne, %39, %c0_i32_23 : i32
    scf.if %40 {
      %c0_24 = arith.constant 0 : index
      %c0_25 = arith.constant 0 : index
      %41 = vector.load %arg13[%c0_24, %c0_25] : memref<8x32xf32, #tpu.memory_space<vmem>>, vector<8x32xf32>
      %c0_26 = arith.constant 0 : index
      %c0_27 = arith.constant 0 : index
      %42 = vector.load %arg12[%c0_26, %c0_27] : memref<8x1xf32, #tpu.memory_space<vmem>>, vector<8x1xf32>
      %43 = tpu.reciprocal %42 : vector<8x1xf32> -> vector<8x1xf32>
      %44 = vector.broadcast %43 : vector<8x1xf32> to vector<8x32xf32>
      %45 = arith.mulf %41, %44 : vector<8x32xf32>
      %c0_28 = arith.constant 0 : index
      %c32 = arith.constant 32 : index
      %46 = vector.load %arg9[%c0_28, %c32] : memref<8x64xf32, #tpu.memory_space<vmem>>, vector<8x32xf32>
      tpu.vector_store %arg9[%c0_28, %c32], %45 {strides = array<i32>} : memref<8x64xf32, #tpu.memory_space<vmem>>, vector<8x32xf32>,
    } else {
    }
    return
  }
  func.func @transform_0(%arg0: i32, %arg1: i32) -> (i32, i32) {
    %c0_i32 = arith.constant 0 : i32
    %c0_i32_0 = arith.constant 0 : i32
    return %arg0, %c0_i32 : i32, i32
  }
  func.func @transform_1(%arg0: i32, %arg1: i32) -> (i32, i32, i32) {
    %c0_i32 = arith.constant 0 : i32
    %c0_i32_0 = arith.constant 0 : i32
    return %arg1, %arg0, %c0_i32 : i32, i32, i32
  }
  func.func @transform_2(%arg0: i32, %arg1: i32) -> (i32, i32) {
    %c0_i32 = arith.constant 0 : i32
    %c0_i32_0 = arith.constant 0 : i32
    %c0_i32_1 = arith.constant 0 : i32
    return %c0_i32, %c0_i32_0 : i32, i32
  }
  func.func @transform_3(%arg0: i32, %arg1: i32) -> (i32, i32) {
    %c0_i32 = arith.constant 0 : i32
    %c0_i32_0 = arith.constant 0 : i32
    %c0_i32_1 = arith.constant 0 : i32
    return %c0_i32, %c0_i32_0 : i32, i32
  }
  func.func @transform_4(%arg0: i32, %arg1: i32) -> (i32, i32) {
    %c0_i32 = arith.constant 0 : i32
    %c0_i32_0 = arith.constant 0 : i32
    %c0_i32_1 = arith.constant 0 : i32
    return %c0_i32, %c0_i32_0 : i32, i32
  }
  func.func @transform_5(%arg0: i32, %arg1: i32) -> (i32, i32) {
    %c0_i32 = arith.constant 0 : i32
    %c0_i32_0 = arith.constant 0 : i32
    %c0_i32_1 = arith.constant 0 : i32
    return %c0_i32, %c0_i32_0 : i32, i32
  }
  func.func @transform_6(%arg0: i32, %arg1: i32) -> (i32, i32) {
    %c0_i32 = arith.constant 0 : i32
    %c0_i32_0 = arith.constant 0 : i32
    %c0_i32_1 = arith.constant 0 : i32
    return %c0_i32, %c0_i32_0 : i32, i32
  }
  func.func @transform_7(%arg0: i32, %arg1: i32) -> (i32, i32) {
    %c0_i32 = arith.constant 0 : i32
    %c0_i32_0 = arith.constant 0 : i32
    return %arg0, %c0_i32 : i32, i32
  }
}

</mosaic_0001>

<llo_original>
// kernel: tpu_custom_call.1
$region0: #{tpu_custom_call.1}
  #allocation0 [shape = 'u32[]', space=smem, size = 0x4, offset = 0x4, fixed_abs, tag = 'smem constant byte address 0x4 - core index']
  #allocation1 [shape = 'u32[144,128]{1,0:T(1,128)}', space=vmem, size = 0x12000, scoped, tag = 'internal scratch']
  #allocation2 [shape = 'f32[8,32]{1,0:T(8,128)}', space=vmem, size = 0x1000, scoped, tag = 'scratch operand']
  #allocation3 [shape = 'f32[8,1]{1,0:T(8,128)}', space=vmem, size = 0x1000, scoped, tag = 'scratch operand']
  #allocation4 [shape = 'f32[8,1]{1,0:T(8,128)}', space=vmem, size = 0x1000, scoped, tag = 'scratch operand']
  #allocation5 [shape = 'f32[8,32]{1,0:T(8,128)}', space=vmem, size = 0x1000, scoped, tag = 'scratch operand']
  %s0 = inlined_call_operand.hbm [shape: f32[16,48], index: 0, kind: input, shape index: {}]
  %s1 = inlined_call_operand.hbm [shape: f32[32,16,32], index: 1, kind: input, shape index: {}]
  %s2 = inlined_call_operand.hbm [shape: f32[48,128], index: 2, kind: input, shape index: {}]
  %s3 = inlined_call_operand.vmem [shape: f32[1,128], index: 3, kind: input, shape index: {}]
  %s4 = inlined_call_operand.hbm [shape: f32[32,32], index: 4, kind: input, shape index: {}]
  %s5 = inlined_call_operand.vmem [shape: f32[1,32], index: 5, kind: input, shape index: {}]
  %s6 = inlined_call_operand.vmem [shape: f32[1,32], index: 6, kind: input, shape index: {}]
  %s7 = inlined_call_operand.hbm [shape: f32[16,64], index: 7, kind: output, shape index: {}]
  %s8 = sld [smem:[#allocation0]]
  $region85: #{tpu_custom_call.1} parent=0
    _
  %s10 = ssub.s32 1, %s8
  %s11 = scalar_select 0, %s10, %s8
  $region1: #{tpu_custom_call.1} parent=0
    #allocation6 [shape = 'u8[8192]{0}', space=vmem, size = 0x2000, scoped, tag = 'input window, operand 0']
    #allocation7 [shape = 's32[2]{0}', space=sflag, size = 0x8, scoped, tag = 'scoped memory for tpu_custom_call.1']
    #allocation8 [shape = 's32[2]{0}', space=sflag, size = 0x8, scoped, tag = 'scoped memory for tpu_custom_call.1']
    #allocation9 [shape = 'u8[262144]{0}', space=vmem, size = 0x40000, scoped, tag = 'input window, operand 1']
    #allocation10 [shape = 's32[2]{0}', space=sflag, size = 0x8, scoped, tag = 'scoped memory for tpu_custom_call.1']
    #allocation11 [shape = 'u8[24576]{0}', space=vmem, size = 0x6000, scoped, tag = 'input window, operand 2, single buffered']
    #allocation12 [shape = 'u8[16384]{0}', space=vmem, size = 0x4000, scoped, tag = 'input window, operand 4, single buffered']
    #allocation13 [shape = 's32[1]{0}', space=sflag, size = 0x4, scoped, tag = 'scoped memory for tpu_custom_call.1']
    #allocation14 [shape = 'u8[8192]{0}', space=vmem, size = 0x2000, scoped, tag = 'output window, operand 0']
    %12 = vsyncpa [#allocation7], 0
    %s13 = scalar_lea.sflag [#allocation7], 1
    %14 = vsyncpa %s13, 0
    %15 = vsyncpa [#allocation10], 0
    %s16 = scalar_lea.sflag [#allocation10], 1
    %17 = vsyncpa %s16, 0
    %18 = vsyncpa [#allocation13], 0
    %19 = vsyncpa [#allocation8], 0
    %s20 = scalar_lea.sflag [#allocation8], 1
    %21 = vsyncpa %s20, 0
    loop: start=0, step=1, limit=4
    $region2: #{tpu_custom_call.1} parent=1 // loop_pre_header
      _
    $region3: #{tpu_custom_call.1} parent=1 // loop_header
      %s23 = sphi 0, %s27
      %p24 = scmp.ge.s32.totalorder %s23, 4
      %s30 = sphi 0, %s42
      %s31 = sphi 0, %s38
      %s32 = sphi 0, %s30
      %s33 = sphi 0, %s31
      %s34 = sphi 0, %s32
      %s35 = sphi 0, %s33
      %s45 = sphi 0, %s47
      %s48 = sphi 0, %s45
      %s49 = sphi 0, %s48
      %s65 = sphi 0, %s49
      %s73 = sphi 0, %s75
      %s76 = sphi 0, %s73
      %s77 = sphi 0, %s76
      %s93 = sphi 0, %s77
      %s97 = sphi 0, %s97
      %s99 = sphi 0, %s97
      %s100 = sphi 0, %s99
      %s114 = sphi 0, %s100
      %s118 = sphi 0, %s118
      %s120 = sphi 0, %s118
      %s121 = sphi 0, %s120
      %s135 = sphi 0, %s121
      %s139 = sphi 0, %s139
      %s141 = sphi 0, %s139
      %s142 = sphi 0, %s141
      %s156 = sphi 0, %s142
      %s160 = sphi 0, %s160
      %s162 = sphi 0, %s160
      %s163 = sphi 0, %s162
      %s177 = sphi 0, %s163
      %s181 = sphi 0, %s181
      %s183 = sphi 0, %s181
      %s184 = sphi 0, %s183
      %s198 = sphi 0, %s184
      %s204 = sphi 0, %s206
      %s207 = sphi 0, %s204
      %s208 = sphi 0, %s207
      %s224 = sphi 0, %s208
    $region4: #{tpu_custom_call.1} parent=1 // loop_header_branch
      %26 = sbr.rel (%p24) target = $region8
    $region5: #{tpu_custom_call.1} parent=1 // loop_body
      %s28 = ssub.s32 %s23, 1
      %s29 = ssub.s32 %s23, 2
      %s36 = sadd.s32 1, %s31
      %p37 = scmp.ge.s32.totalorder %s36, 1
      %s38 = scalar_select %p37, 0, %s36
      %s39 = sadd.s32 1, %s30
      %s40 = scalar_select %p37, %s39, %s30
      %p41 = scmp.ge.s32.totalorder %s40, 2
      %s42 = scalar_select %p41, 0, %s40
      %s43 = ssub.s32 %s30, %s42
      %p44 = scmp.eq.s32.totalorder %s43, 0
      %s46 = sadd.s32 %s45, 1
      %s47 = scalar_select %p44, %s45, %s46
      %p50 = pneg %p44
      %p51 = scmp.eq.s32.totalorder %s23, 1
      %p52 = por %p50, %p51
      %p53 = scmp.ne.s32.totalorder %s45, %s48
      %p54 = scmp.eq.s32.totalorder %s23, 0
      %p55 = por %p53, %p54
      %p56 = scmp.ne.s32.totalorder %s45, %s48
      %p57 = scmp.eq.s32.totalorder %s28, 1
      %p58 = por %p56, %p57
      %p59 = scmp.ne.s32.totalorder %s48, %s49
      %p60 = scmp.eq.s32.totalorder %s28, 0
      %p61 = por %p59, %p60
      %p62 = scmp.ne.s32.totalorder %s48, %s49
      %p63 = scmp.eq.s32.totalorder %s29, 1
      %p64 = por %p62, %p63
      %p66 = scmp.ne.s32.totalorder %s49, %s65
      %p67 = scmp.eq.s32.totalorder %s29, 0
      %p68 = por %p66, %p67
      %s69 = ssub.s32 %s31, %s38
      %s70 = ssub.s32 %s30, %s42
      %s71 = sor.u32 %s69, %s70
      %p72 = scmp.eq.s32.totalorder %s71, 0
      %s74 = sadd.s32 %s73, 1
      %s75 = scalar_select %p72, %s73, %s74
      %p78 = pneg %p72
      %p79 = scmp.eq.s32.totalorder %s23, 1
      %p80 = por %p78, %p79
      %p81 = scmp.ne.s32.totalorder %s73, %s76
      %p82 = scmp.eq.s32.totalorder %s23, 0
      %p83 = por %p81, %p82
      %p84 = scmp.ne.s32.totalorder %s73, %s76
      %p85 = scmp.eq.s32.totalorder %s28, 1
      %p86 = por %p84, %p85
      %p87 = scmp.ne.s32.totalorder %s76, %s77
      %p88 = scmp.eq.s32.totalorder %s28, 0
      %p89 = por %p87, %p88
      %p90 = scmp.ne.s32.totalorder %s76, %s77
      %p91 = scmp.eq.s32.totalorder %s29, 1
      %p92 = por %p90, %p91
      %p94 = scmp.ne.s32.totalorder %s77, %s93
      %p95 = scmp.eq.s32.totalorder %s29, 0
      %p96 = por %p94, %p95
      %s98 = sadd.s32 %s97, 1
      %p101 = scmp.eq.s32.totalorder %s23, 1
      %p102 = scmp.ne.s32.totalorder %s97, %s99
      %p103 = scmp.eq.s32.totalorder %s23, 0
      %p104 = por %p102, %p103
      %p105 = scmp.ne.s32.totalorder %s97, %s99
      %p106 = scmp.eq.s32.totalorder %s28, 1
      %p107 = por %p105, %p106
      %p108 = scmp.ne.s32.totalorder %s99, %s100
      %p109 = scmp.eq.s32.totalorder %s28, 0
      %p110 = por %p108, %p109
      %p111 = scmp.ne.s32.totalorder %s99, %s100
      %p112 = scmp.eq.s32.totalorder %s29, 1
      %p113 = por %p111, %p112
      %p115 = scmp.ne.s32.totalorder %s100, %s114
      %p116 = scmp.eq.s32.totalorder %s29, 0
      %p117 = por %p115, %p116
      %s119 = sadd.s32 %s118, 1
      %p122 = scmp.eq.s32.totalorder %s23, 1
      %p123 = scmp.ne.s32.totalorder %s118, %s120
      %p124 = scmp.eq.s32.totalorder %s23, 0
      %p125 = por %p123, %p124
      %p126 = scmp.ne.s32.totalorder %s118, %s120
      %p127 = scmp.eq.s32.totalorder %s28, 1
      %p128 = por %p126, %p127
      %p129 = scmp.ne.s32.totalorder %s120, %s121
      %p130 = scmp.eq.s32.totalorder %s28, 0
      %p131 = por %p129, %p130
      %p132 = scmp.ne.s32.totalorder %s120, %s121
      %p133 = scmp.eq.s32.totalorder %s29, 1
      %p134 = por %p132, %p133
      %p136 = scmp.ne.s32.totalorder %s121, %s135
      %p137 = scmp.eq.s32.totalorder %s29, 0
      %p138 = por %p136, %p137
      %s140 = sadd.s32 %s139, 1
      %p143 = scmp.eq.s32.totalorder %s23, 1
      %p144 = scmp.ne.s32.totalorder %s139, %s141
      %p145 = scmp.eq.s32.totalorder %s23, 0
      %p146 = por %p144, %p145
      %p147 = scmp.ne.s32.totalorder %s139, %s141
      %p148 = scmp.eq.s32.totalorder %s28, 1
      %p149 = por %p147, %p148
      %p150 = scmp.ne.s32.totalorder %s141, %s142
      %p151 = scmp.eq.s32.totalorder %s28, 0
      %p152 = por %p150, %p151
      %p153 = scmp.ne.s32.totalorder %s141, %s142
      %p154 = scmp.eq.s32.totalorder %s29, 1
      %p155 = por %p153, %p154
      %p157 = scmp.ne.s32.totalorder %s142, %s156
      %p158 = scmp.eq.s32.totalorder %s29, 0
      %p159 = por %p157, %p158
      %s161 = sadd.s32 %s160, 1
      %p164 = scmp.eq.s32.totalorder %s23, 1
      %p165 = scmp.ne.s32.totalorder %s160, %s162
      %p166 = scmp.eq.s32.totalorder %s23, 0
      %p167 = por %p165, %p166
      %p168 = scmp.ne.s32.totalorder %s160, %s162
      %p169 = scmp.eq.s32.totalorder %s28, 1
      %p170 = por %p168, %p169
      %p171 = scmp.ne.s32.totalorder %s162, %s163
      %p172 = scmp.eq.s32.totalorder %s28, 0
      %p173 = por %p171, %p172
      %p174 = scmp.ne.s32.totalorder %s162, %s163
      %p175 = scmp.eq.s32.totalorder %s29, 1
      %p176 = por %p174, %p175
      %p178 = scmp.ne.s32.totalorder %s163, %s177
      %p179 = scmp.eq.s32.totalorder %s29, 0
      %p180 = por %p178, %p179
      %s182 = sadd.s32 %s181, 1
      %p185 = scmp.eq.s32.totalorder %s23, 1
      %p186 = scmp.ne.s32.totalorder %s181, %s183
      %p187 = scmp.eq.s32.totalorder %s23, 0
      %p188 = por %p186, %p187
      %p189 = scmp.ne.s32.totalorder %s181, %s183
      %p190 = scmp.eq.s32.totalorder %s28, 1
      %p191 = por %p189, %p190
      %p192 = scmp.ne.s32.totalorder %s183, %s184
      %p193 = scmp.eq.s32.totalorder %s28, 0
      %p194 = por %p192, %p193
      %p195 = scmp.ne.s32.totalorder %s183, %s184
      %p196 = scmp.eq.s32.totalorder %s29, 1
      %p197 = por %p195, %p196
      %p199 = scmp.ne.s32.totalorder %s184, %s198
      %p200 = scmp.eq.s32.totalorder %s29, 0
      %p201 = por %p199, %p200
      %s202 = ssub.s32 %s30, %s42
      %p203 = scmp.eq.s32.totalorder %s202, 0
      %s205 = sadd.s32 %s204, 1
      %s206 = scalar_select %p203, %s204, %s205
      %p209 = pneg %p203
      %p210 = scmp.eq.s32.totalorder %s23, 1
      %p211 = por %p209, %p210
      %p212 = scmp.ne.s32.totalorder %s204, %s207
      %p213 = scmp.eq.s32.totalorder %s23, 0
      %p214 = por %p212, %p213
      %p215 = scmp.ne.s32.totalorder %s204, %s207
      %p216 = scmp.eq.s32.totalorder %s28, 1
      %p217 = por %p215, %p216
      %p218 = scmp.ne.s32.totalorder %s207, %s208
      %p219 = scmp.eq.s32.totalorder %s28, 0
      %p220 = por %p218, %p219
      %p221 = scmp.ne.s32.totalorder %s207, %s208
      %p222 = scmp.eq.s32.totalorder %s29, 1
      %p223 = por %p221, %p222
      %p225 = scmp.ne.s32.totalorder %s208, %s224
      %p226 = scmp.eq.s32.totalorder %s29, 0
      %p227 = por %p225, %p226
      %p228 = scmp.le.s32.totalorder 1, %s23
      %p229 = scmp.lt.s32.totalorder %s23, 3
      %p230 = pnand %p228, %p229
      %p231 = pneg %p230
      // Predicated region
      $region9: #{tpu_custom_call.1} parent=5 // pred_check
        _
      $region10: #{tpu_custom_call.1} parent=5 // pred_check_branch
        %233 = sbr.rel (%p230) target = $region12
      $region11: #{tpu_custom_call.1} parent=5 // pred_region
        %s234 = ssub.s32 %s23, 1
        // Predicated region
        $region13: #{tpu_custom_call.1} parent=11 // pred_check
          %p235 = pneg %p110
        $region14: #{tpu_custom_call.1} parent=11 // pred_check_branch
          %237 = sbr.rel (%p235) target = $region16
        $region15: #{tpu_custom_call.1} parent=11 // pred_region
          %s239 = ssub.s32 768, 768
          %240 = vsyncadd [#allocation10], %s239
          %s241 = sshll.u32 [#allocation11], 4
          %s242 = int_to_ptr.vmem [resolvable:$true] %s241
          %247 = dma.hbm_to_vmem [thread:$0]  %s2, 768, %s242, [#allocation10], 128, 128, 8
        $region16: #{tpu_custom_call.1} parent=11 // pred_fallthru
          _
        // Predicated region
        $region17: #{tpu_custom_call.1} parent=11 // pred_check
          %p248 = pneg %p131
        $region18: #{tpu_custom_call.1} parent=11 // pred_check_branch
          %250 = sbr.rel (%p248) target = $region20
        $region19: #{tpu_custom_call.1} parent=11 // pred_region
          _
        $region20: #{tpu_custom_call.1} parent=11 // pred_fallthru
          _
        // Predicated region
        $region21: #{tpu_custom_call.1} parent=11 // pred_check
          %p251 = pneg %p152
        $region22: #{tpu_custom_call.1} parent=11 // pred_check_branch
          %253 = sbr.rel (%p251) target = $region24
        $region23: #{tpu_custom_call.1} parent=11 // pred_region
          %s255 = ssub.s32 512, 512
          %256 = vsyncadd [#allocation13], %s255
          %s257 = sshll.u32 [#allocation12], 4
          %s258 = int_to_ptr.vmem [resolvable:$true] %s257
          %263 = dma.hbm_to_vmem [thread:$0]  %s4, 512, %s258, [#allocation13], 128, 128, 8
        $region24: #{tpu_custom_call.1} parent=11 // pred_fallthru
          _
        // Predicated region
        $region25: #{tpu_custom_call.1} parent=11 // pred_check
          %p264 = pneg %p173
        $region26: #{tpu_custom_call.1} parent=11 // pred_check_branch
          %266 = sbr.rel (%p264) target = $region28
        $region27: #{tpu_custom_call.1} parent=11 // pred_region
          _
        $region28: #{tpu_custom_call.1} parent=11 // pred_fallthru
          _
        // Predicated region
        $region29: #{tpu_custom_call.1} parent=11 // pred_check
          %p267 = pneg %p194
        $region30: #{tpu_custom_call.1} parent=11 // pred_check_branch
          %269 = sbr.rel (%p267) target = $region32
        $region31: #{tpu_custom_call.1} parent=11 // pred_region
          _
        $region32: #{tpu_custom_call.1} parent=11 // pred_fallthru
          _
      $region12: #{tpu_custom_call.1} parent=5 // pred_fallthru
        _
      %p270 = scmp.lt.s32.totalorder %s23, 2
      // Predicated region
      $region33: #{tpu_custom_call.1} parent=5 // pred_check
        %p271 = pneg %p270
      $region34: #{tpu_custom_call.1} parent=5 // pred_check_branch
        %273 = sbr.rel (%p271) target = $region36
      $region35: #{tpu_custom_call.1} parent=5 // pred_region
        // Predicated region
        $region37: #{tpu_custom_call.1} parent=35 // pred_check
          %p274 = pneg %p55
        $region38: #{tpu_custom_call.1} parent=35 // pred_check_branch
          %276 = sbr.rel (%p274) target = $region40
        $region39: #{tpu_custom_call.1} parent=35 // pred_region
          %s277 = sand.u32 %s45, 1
          %s278 = scalar_lea.sflag [#allocation7], %s277
          %s279 = sand.u32 %s45, 1
          %s280 = smul.addr %s279, 8
          %s281 = scalar_lea.vmem [#allocation6], %s280
          %s283 = ssub.s32 128, 128
          %284 = vsyncadd %s278, %s283
          %s285 = smul.addr %s30, 128
          %s286 = scalar_lea.hbm %s0, %s285
          %s288 = sshll.u32 %s281, 4
          %s289 = int_to_ptr.vmem [resolvable:$true] %s288
          %291 = dma.hbm_to_vmem [thread:$0]  %s286, 128, %s289, %s278
        $region40: #{tpu_custom_call.1} parent=35 // pred_fallthru
          _
        // Predicated region
        $region41: #{tpu_custom_call.1} parent=35 // pred_check
          %p292 = pneg %p83
        $region42: #{tpu_custom_call.1} parent=35 // pred_check_branch
          %294 = sbr.rel (%p292) target = $region44
        $region43: #{tpu_custom_call.1} parent=35 // pred_region
          %s295 = sand.u32 %s23, 1
          %s296 = scalar_lea.sflag [#allocation10], %s295
          %s297 = sand.u32 %s73, 1
          %s298 = smul.addr %s297, 256
          %s299 = scalar_lea.vmem [#allocation9], %s298
          %s300 = smul.u32 32, %s31
          %s302 = ssub.s32 4096, 4096
          %303 = vsyncadd %s296, %s302
          %s304 = smul.addr %s300, 2
          %s305 = sadd.s32 %s30, %s304
          %s306 = smul.addr %s305, 128
          %s307 = scalar_lea.hbm %s1, %s306
          %s308 = sshll.u32 %s299, 4
          %s309 = int_to_ptr.vmem [resolvable:$true] %s308
          %314 = dma.hbm_to_vmem [thread:$0]  %s307, 4096, %s309, %s296, 256, 128, 8
        $region44: #{tpu_custom_call.1} parent=35 // pred_fallthru
          _
      $region36: #{tpu_custom_call.1} parent=5 // pred_fallthru
        _
      %p315 = scmp.le.s32.totalorder 1, %s23
      %p316 = scmp.lt.s32.totalorder %s23, 3
      %p317 = pnand %p315, %p316
      %p318 = pneg %p317
      // Predicated region
      $region45: #{tpu_custom_call.1} parent=5 // pred_check
        _
      $region46: #{tpu_custom_call.1} parent=5 // pred_check_branch
        %320 = sbr.rel (%p317) target = $region48
      $region47: #{tpu_custom_call.1} parent=5 // pred_region
        %s321 = ssub.s32 %s23, 1
        %s322 = sand.u32 %s48, 1
        %s323 = scalar_lea.sflag [#allocation7], %s322
        %s324 = sand.u32 %s48, 1
        %s325 = smul.addr %s324, 8
        %s326 = scalar_lea.vmem [#allocation6], %s325
        // Predicated region
        $region49: #{tpu_custom_call.1} parent=47 // pred_check
          %p327 = pneg %p61
        $region50: #{tpu_custom_call.1} parent=47 // pred_check_branch
          %329 = sbr.rel (%p327) target = $region52
        $region51: #{tpu_custom_call.1} parent=47 // pred_region
          %330 = dma.done %s323, 128
        $region52: #{tpu_custom_call.1} parent=47 // pred_fallthru
          _
        %s331 = sand.u32 %s28, 1
        %s332 = scalar_lea.sflag [#allocation10], %s331
        %s333 = sand.u32 %s76, 1
        %s334 = smul.addr %s333, 256
        %s335 = scalar_lea.vmem [#allocation9], %s334
        // Predicated region
        $region53: #{tpu_custom_call.1} parent=47 // pred_check
          %p336 = pneg %p89
        $region54: #{tpu_custom_call.1} parent=47 // pred_check_branch
          %338 = sbr.rel (%p336) target = $region56
        $region55: #{tpu_custom_call.1} parent=47 // pred_region
          %339 = dma.done %s332, 4096
        $region56: #{tpu_custom_call.1} parent=47 // pred_fallthru
          _
        // Predicated region
        $region57: #{tpu_custom_call.1} parent=47 // pred_check
          %p340 = pneg %p110
        $region58: #{tpu_custom_call.1} parent=47 // pred_check_branch
          %342 = sbr.rel (%p340) target = $region60
        $region59: #{tpu_custom_call.1} parent=47 // pred_region
          %343 = dma.done [#allocation10], 768
        $region60: #{tpu_custom_call.1} parent=47 // pred_fallthru
          _
        // Predicated region
        $region61: #{tpu_custom_call.1} parent=47 // pred_check
          %p344 = pneg %p152
        $region62: #{tpu_custom_call.1} parent=47 // pred_check_branch
          %346 = sbr.rel (%p344) target = $region64
        $region63: #{tpu_custom_call.1} parent=47 // pred_region
          %347 = dma.done [#allocation13], 512
        $region64: #{tpu_custom_call.1} parent=47 // pred_fallthru
          _
        %s348 = sand.u32 %s48, 1
        %s349 = scalar_lea.sflag [#allocation7], %s348
        %s350 = sand.u32 %s48, 1
        %s351 = smul.addr %s350, 8
        %s352 = scalar_lea.vmem [#allocation6], %s351
        %p353 = pneg %p61
        %p354 = pneg %p58
        %s355 = sand.u32 %s28, 1
        %s356 = scalar_lea.sflag [#allocation10], %s355
        %s357 = sand.u32 %s76, 1
        %s358 = smul.addr %s357, 256
        %s359 = scalar_lea.vmem [#allocation9], %s358
        %p360 = pneg %p89
        %p361 = pneg %p86
        %p362 = pneg %p110
        %p363 = pneg %p107
        %p364 = pneg %p131
        %p365 = pneg %p128
        %p366 = pneg %p152
        %p367 = pneg %p149
        %p368 = pneg %p173
        %p369 = pneg %p170
        %p370 = pneg %p194
        %p371 = pneg %p191
        %p372 = pneg %p220
        %p373 = pneg %p217
        %s374 = sand.u32 %s207, 1
        %s375 = scalar_lea.sflag [#allocation8], %s374
        %s376 = sand.u32 %s207, 1
        %s377 = smul.addr %s376, 8
        %s378 = scalar_lea.vmem [#allocation14], %s377
        %s379 = smul.u32 32, %s33
        %p380 = scmp.eq.s32.totalorder %s33, 0
        // Predicated region
        $region65: #{tpu_custom_call.1} parent=47 // pred_check
          %p381 = pneg %p380
        $region66: #{tpu_custom_call.1} parent=47 // pred_check_branch
          %383 = sbr.rel (%p381) target = $region68
        $region67: #{tpu_custom_call.1} parent=47 // pred_region
          %v384 = vld [vmem:[%s326] sm:$0xff]
          %v385 = vld [vmem:[#allocation11] sm:$0xff]
          %v386 = vld [vmem:[#allocation11 + $0x8] sm:$0xff]
          %v387 = vld [vmem:[#allocation11 + $0x10] sm:$0xff]
          %v388 = vld [vmem:[#allocation11 + $0x18] sm:$0xff]
          %v389 = vld [vmem:[#allocation11 + $0x20] sm:$0xff]
          %v390 = vld [vmem:[#allocation11 + $0x28] sm:$0xff]
          %v391 = vld [vmem:[%s3] sm:$0x1]
          %v393 = vlaneseq
          %v394 = vshrl.u32 %v393, 7
          %v395 = vsub.s32 0, %v394
          %v396 = vrot.slane %v391, %v395
          %vm398 = vcmask 392192
          %v400 = vsel %vm398, %v384, 0
          %402 = vmatprep.subr.mxu0 0.0
          %403 = vmatpush1.msra.mxu0 %v385
          %404 = vmatprep.subr.mxu0 0.0
          %405 = vmatpush1.msra.mxu0 %v386
          %406 = vmatprep.subr.mxu0 0.0
          %407 = vmatpush1.msra.mxu0 %v387
          %408 = vmatprep.subr.mxu0 0.0
          %409 = vmatpush1.msra.mxu0 %v388
          %410 = vmatprep.subr.mxu0 0.0
          %411 = vmatpush1.msra.mxu0 %v389
          %412 = vmatprep.subr.mxu0 0.0
          %413 = vmatpush1.msra.mxu0 %v390
          %414 = vmatprep.subr.mxu0 0.0
          %415 = vmatpush1.msra.mxu0 0.0
          %416 = vmatprep.subr.mxu0 0.0
          %417 = vmatpush1.msra.mxu0 0.0
          %418 = vmatprep.subr.mxu0 0.0
          %419 = vmatpush1.msra.mxu0 0.0
          %420 = vmatprep.subr.mxu0 0.0
          %421 = vmatpush1.msra.mxu0 0.0
          %422 = vmatprep.subr.mxu0 0.0
          %423 = vmatpush1.msra.mxu0 0.0
          %424 = vmatprep.subr.mxu0 0.0
          %425 = vmatpush1.msra.mxu0 0.0
          %426 = vmatprep.subr.mxu0 0.0
          %427 = vmatpush1.msra.mxu0 0.0
          %428 = vmatprep.subr.mxu0 0.0
          %429 = vmatpush1.msra.mxu0 0.0
          %430 = vmatprep.subr.mxu0 0.0
          %431 = vmatpush1.msra.mxu0 0.0
          %432 = vmatprep.subr.mxu0 0.0
          %433 = vmatpush1.msra.mxu0 0.0
          %434 = vmatprep.subr.mxu0 0.0
          %435 = vmatpush1.msra.mxu0 0.0
          %436 = vmatprep.subr.mxu0 0.0
          %437 = vmatpush1.msra.mxu0 0.0
          %438 = vmatprep.subr.mxu0 0.0
          %439 = vmatpush1.msra.mxu0 0.0
          %440 = vmatprep.subr.mxu0 0.0
          %441 = vmatpush1.msra.mxu0 0.0
          %442 = vmatprep.subr.mxu0 0.0
          %443 = vmatpush1.msra.mxu0 0.0
          %444 = vmatprep.subr.mxu0 0.0
          %445 = vmatpush1.msra.mxu0 0.0
          %446 = vmatprep.subr.mxu0 0.0
          %447 = vmatpush1.msra.mxu0 0.0
          %448 = vmatprep.subr.mxu0 0.0
          %449 = vmatpush1.msra.mxu0 0.0
          %450 = vmatprep.subr.mxu0 0.0
          %451 = vmatpush1.msra.mxu0 0.0
          %452 = vmatprep.subr.mxu0 0.0
          %453 = vmatpush1.msra.mxu0 0.0
          %454 = vmatprep.subr.mxu0 0.0
          %455 = vmatpush1.msra.mxu0 0.0
          %456 = vmatprep.subr.mxu0 0.0
          %457 = vmatpush1.msra.mxu0 0.0
          %458 = vmatprep.subr.mxu0 0.0
          %459 = vmatpush1.msra.mxu0 0.0
          %460 = vmatprep.subr.mxu0 0.0
          %461 = vmatpush1.msra.mxu0 0.0
          %462 = vmatprep.subr.mxu0 0.0
          %463 = vmatpush1.msra.mxu0 0.0
          %464 = vmatprep.subr.mxu0 0.0
          %465 = vmatpush1.msra.mxu0 0.0
          %466 = vmatprep.mubr.f32.mxu0 0.0
          %467 = vmatmul.mubr.f32.gmra.mrb[0].mxu0 %v400
          %v468 = vpop.f32.mrb[0].mxu0
          %v469 = vadd.f32 %v396, %v468
          %v470 = vpop.f32.mrb[0].mxu0
          %471 = vdwg.mxu0
          %v472 = vxor.u32 %v469, 2147483648
          %v473 = vmul.f32 %v472, 1.442695
          %v474 = vpow.pop %v473
          %v475 = vadd.f32 %v474, 1.0
          %v476 = vrcp.pop %v475
          %v477 = vmul.f32 1.0, %v476
          %479 = vrot.lane.b32.xlu0 %v469, 32
          %v480 = vpop.permute.xlu0 %479
          %v482 = vmul.f32 %v477, %v480
          %484 = vrot.lane.b32.xlu0 %v482, 64
          %v485 = vpop.permute.xlu0 %484
          %v487 = vadd.f32 %v469, %v485
          %v488 = vtanh.pop %v487
          %v489 = vsub.f32 1.0, %v477
          %491 = vrot.lane.b32.xlu0 %v488, 96
          %v492 = vpop.permute.xlu0 %491
          %v494 = vmul.f32 %v489, %v492
          %495 = vrot.lane.b32.xlu0 %v384, 32
          %v496 = vpop.permute.xlu0 %495
          %v498 = vmul.f32 %v477, %v496
          %v499 = vadd.f32 %v494, %v498
          %501 = vrot.lane.b32.xlu0 %v499, 96
          %v502 = vpop.permute.xlu0 %501
          %vm504 = vcmask 261120
          %505 = vst.msk [vmem:[%s378] sm:$0xff] %vm504, %v502
          %v506 = vld [vmem:[#allocation12] sm:$0xff]
          %v507 = vld [vmem:[#allocation12 + $0x8] sm:$0xff]
          %v508 = vld [vmem:[#allocation12 + $0x10] sm:$0xff]
          %v509 = vld [vmem:[#allocation12 + $0x18] sm:$0xff]
          %v510 = vld [vmem:[%s5] sm:$0x1]
          %v512 = vlaneseq
          %v513 = vshrl.u32 %v512, 7
          %v514 = vsub.s32 0, %v513
          %v515 = vrot.slane %v510, %v514
          %v517 = vsel %vm504, %v502, 0
          %519 = vmatprep.subr.mxu0 0.0
          %520 = vmatpush1.msra.mxu0 %v506
          %521 = vmatprep.subr.mxu0 0.0
          %522 = vmatpush1.msra.mxu0 %v507
          %523 = vmatprep.subr.mxu0 0.0
          %524 = vmatpush1.msra.mxu0 %v508
          %525 = vmatprep.subr.mxu0 0.0
          %526 = vmatpush1.msra.mxu0 %v509
          %527 = vmatprep.subr.mxu0 0.0
          %528 = vmatpush1.msra.mxu0 0.0
          %529 = vmatprep.subr.mxu0 0.0
          %530 = vmatpush1.msra.mxu0 0.0
          %531 = vmatprep.subr.mxu0 0.0
          %532 = vmatpush1.msra.mxu0 0.0
          %533 = vmatprep.subr.mxu0 0.0
          %534 = vmatpush1.msra.mxu0 0.0
          %535 = vmatprep.subr.mxu0 0.0
          %536 = vmatpush1.msra.mxu0 0.0
          %537 = vmatprep.subr.mxu0 0.0
          %538 = vmatpush1.msra.mxu0 0.0
          %539 = vmatprep.subr.mxu0 0.0
          %540 = vmatpush1.msra.mxu0 0.0
          %541 = vmatprep.subr.mxu0 0.0
          %542 = vmatpush1.msra.mxu0 0.0
          %543 = vmatprep.subr.mxu0 0.0
          %544 = vmatpush1.msra.mxu0 0.0
          %545 = vmatprep.subr.mxu0 0.0
          %546 = vmatpush1.msra.mxu0 0.0
          %547 = vmatprep.subr.mxu0 0.0
          %548 = vmatpush1.msra.mxu0 0.0
          %549 = vmatprep.subr.mxu0 0.0
          %550 = vmatpush1.msra.mxu0 0.0
          %551 = vmatprep.subr.mxu0 0.0
          %552 = vmatpush1.msra.mxu0 0.0
          %553 = vmatprep.subr.mxu0 0.0
          %554 = vmatpush1.msra.mxu0 0.0
          %555 = vmatprep.subr.mxu0 0.0
          %556 = vmatpush1.msra.mxu0 0.0
          %557 = vmatprep.subr.mxu0 0.0
          %558 = vmatpush1.msra.mxu0 0.0
          %559 = vmatprep.subr.mxu0 0.0
          %560 = vmatpush1.msra.mxu0 0.0
          %561 = vmatprep.subr.mxu0 0.0
          %562 = vmatpush1.msra.mxu0 0.0
          %563 = vmatprep.subr.mxu0 0.0
          %564 = vmatpush1.msra.mxu0 0.0
          %565 = vmatprep.subr.mxu0 0.0
          %566 = vmatpush1.msra.mxu0 0.0
          %567 = vmatprep.subr.mxu0 0.0
          %568 = vmatpush1.msra.mxu0 0.0
          %569 = vmatprep.subr.mxu0 0.0
          %570 = vmatpush1.msra.mxu0 0.0
          %571 = vmatprep.subr.mxu0 0.0
          %572 = vmatpush1.msra.mxu0 0.0
          %573 = vmatprep.subr.mxu0 0.0
          %574 = vmatpush1.msra.mxu0 0.0
          %575 = vmatprep.subr.mxu0 0.0
          %576 = vmatpush1.msra.mxu0 0.0
          %577 = vmatprep.subr.mxu0 0.0
          %578 = vmatpush1.msra.mxu0 0.0
          %579 = vmatprep.subr.mxu0 0.0
          %580 = vmatpush1.msra.mxu0 0.0
          %581 = vmatprep.subr.mxu0 0.0
          %582 = vmatpush1.msra.mxu0 0.0
          %583 = vmatprep.mubr.f32.mxu0 0.0
          %584 = vmatmul.mubr.f32.gmra.mrb[0].mxu0 %v517
          %v585 = vpop.f32.mrb[0].mxu0
          %v586 = vadd.f32 %v515, %v585
          %v587 = vpop.f32.mrb[0].mxu0
          %588 = vdwg.mxu0
          %589 = vst.msk [vmem:[#allocation2] sm:$0xff] %vm504, %v586
          %vm590 = vcmask 7168
          %591 = vst.msk [vmem:[#allocation3] sm:$0xff] %vm590, -inf
          %592 = vst.msk [vmem:[#allocation4] sm:$0xff] %vm590, 0.0
          %593 = vst.msk [vmem:[#allocation5] sm:$0xff] %vm504, 0.0
        $region68: #{tpu_custom_call.1} parent=47 // pred_fallthru
          _
        %v594 = vld [vmem:[%s335] sm:$0xff]
        %v595 = vld [vmem:[%s335 + $0x8] sm:$0xff]
        %v596 = vld [vmem:[%s335 + $0x10] sm:$0xff]
        %v597 = vld [vmem:[%s335 + $0x18] sm:$0xff]
        %v598 = vld [vmem:[%s335 + $0x20] sm:$0xff]
        %v599 = vld [vmem:[%s335 + $0x28] sm:$0xff]
        %v600 = vld [vmem:[%s335 + $0x30] sm:$0xff]
        %v601 = vld [vmem:[%s335 + $0x38] sm:$0xff]
        %v602 = vld [vmem:[%s335 + $0x40] sm:$0xff]
        %v603 = vld [vmem:[%s335 + $0x48] sm:$0xff]
        %v604 = vld [vmem:[%s335 + $0x50] sm:$0xff]
        %v605 = vld [vmem:[%s335 + $0x58] sm:$0xff]
        %v606 = vld [vmem:[%s335 + $0x60] sm:$0xff]
        %v607 = vld [vmem:[%s335 + $0x68] sm:$0xff]
        %v608 = vld [vmem:[%s335 + $0x70] sm:$0xff]
        %v609 = vld [vmem:[%s335 + $0x78] sm:$0xff]
        %v610 = vld [vmem:[%s335 + $0x80] sm:$0xff]
        %v611 = vld [vmem:[%s335 + $0x88] sm:$0xff]
        %v612 = vld [vmem:[%s335 + $0x90] sm:$0xff]
        %v613 = vld [vmem:[%s335 + $0x98] sm:$0xff]
        %v614 = vld [vmem:[%s335 + $0xa0] sm:$0xff]
        %v615 = vld [vmem:[%s335 + $0xa8] sm:$0xff]
        %v616 = vld [vmem:[%s335 + $0xb0] sm:$0xff]
        %v617 = vld [vmem:[%s335 + $0xb8] sm:$0xff]
        %v618 = vld [vmem:[%s335 + $0xc0] sm:$0xff]
        %v619 = vld [vmem:[%s335 + $0xc8] sm:$0xff]
        %v620 = vld [vmem:[%s335 + $0xd0] sm:$0xff]
        %v621 = vld [vmem:[%s335 + $0xd8] sm:$0xff]
        %v622 = vld [vmem:[%s335 + $0xe0] sm:$0xff]
        %v623 = vld [vmem:[%s335 + $0xe8] sm:$0xff]
        %v624 = vld [vmem:[%s335 + $0xf0] sm:$0xff]
        %v625 = vld [vmem:[%s335 + $0xf8] sm:$0xff]
        %v626 = vld [vmem:[#allocation2] sm:$0xff]
        %v627 = vadd.f32 %v626, %v594
        %v628 = vadd.f32 %v626, %v595
        %v629 = vadd.f32 %v626, %v596
        %v630 = vadd.f32 %v626, %v597
        %v631 = vadd.f32 %v626, %v598
        %v632 = vadd.f32 %v626, %v599
        %v633 = vadd.f32 %v626, %v600
        %v634 = vadd.f32 %v626, %v601
        %v635 = vadd.f32 %v626, %v602
        %v636 = vadd.f32 %v626, %v603
        %v637 = vadd.f32 %v626, %v604
        %v638 = vadd.f32 %v626, %v605
        %v639 = vadd.f32 %v626, %v606
        %v640 = vadd.f32 %v626, %v607
        %v641 = vadd.f32 %v626, %v608
        %v642 = vadd.f32 %v626, %v609
        %v643 = vadd.f32 %v626, %v610
        %v644 = vadd.f32 %v626, %v611
        %v645 = vadd.f32 %v626, %v612
        %v646 = vadd.f32 %v626, %v613
        %v647 = vadd.f32 %v626, %v614
        %v648 = vadd.f32 %v626, %v615
        %v649 = vadd.f32 %v626, %v616
        %v650 = vadd.f32 %v626, %v617
        %v651 = vadd.f32 %v626, %v618
        %v652 = vadd.f32 %v626, %v619
        %v653 = vadd.f32 %v626, %v620
        %v654 = vadd.f32 %v626, %v621
        %v655 = vadd.f32 %v626, %v622
        %v656 = vadd.f32 %v626, %v623
        %v657 = vadd.f32 %v626, %v624
        %v658 = vadd.f32 %v626, %v625
        %v659 = vtanh.pop %v627
        %v660 = vtanh.pop %v628
        %v661 = vtanh.pop %v629
        %v662 = vtanh.pop %v630
        %v663 = vtanh.pop %v631
        %v664 = vtanh.pop %v632
        %v665 = vtanh.pop %v633
        %v666 = vtanh.pop %v634
        %v667 = vtanh.pop %v635
        %v668 = vtanh.pop %v636
        %v669 = vtanh.pop %v637
        %v670 = vtanh.pop %v638
        %v671 = vtanh.pop %v639
        %v672 = vtanh.pop %v640
        %v673 = vtanh.pop %v641
        %v674 = vtanh.pop %v642
        %v675 = vtanh.pop %v643
        %v676 = vtanh.pop %v644
        %v677 = vtanh.pop %v645
        %v678 = vtanh.pop %v646
        %v679 = vtanh.pop %v647
        %v680 = vtanh.pop %v648
        %v681 = vtanh.pop %v649
        %v682 = vtanh.pop %v650
        %v683 = vtanh.pop %v651
        %v684 = vtanh.pop %v652
        %v685 = vtanh.pop %v653
        %v686 = vtanh.pop %v654
        %v687 = vtanh.pop %v655
        %v688 = vtanh.pop %v656
        %v689 = vtanh.pop %v657
        %v690 = vtanh.pop %v658
        %v691 = vld [vmem:[%s6] sm:$0x1]
        %v693 = vlaneseq
        %v694 = vshrl.u32 %v693, 7
        %v695 = vsub.s32 0, %v694
        %v696 = vrot.slane %v691, %v695
        %v698 = vmul.f32 %v659, %v696
        %v699 = vmul.f32 %v660, %v696
        %v700 = vmul.f32 %v661, %v696
        %v701 = vmul.f32 %v662, %v696
        %v702 = vmul.f32 %v663, %v696
        %v703 = vmul.f32 %v664, %v696
        %v704 = vmul.f32 %v665, %v696
        %v705 = vmul.f32 %v666, %v696
        %v706 = vmul.f32 %v667, %v696
        %v707 = vmul.f32 %v668, %v696
        %v708 = vmul.f32 %v669, %v696
        %v709 = vmul.f32 %v670, %v696
        %v710 = vmul.f32 %v671, %v696
        %v711 = vmul.f32 %v672, %v696
        %v712 = vmul.f32 %v673, %v696
        %v713 = vmul.f32 %v674, %v696
        %v714 = vmul.f32 %v675, %v696
        %v715 = vmul.f32 %v676, %v696
        %v716 = vmul.f32 %v677, %v696
        %v717 = vmul.f32 %v678, %v696
        %v718 = vmul.f32 %v679, %v696
        %v719 = vmul.f32 %v680, %v696
        %v720 = vmul.f32 %v681, %v696
        %v721 = vmul.f32 %v682, %v696
        %v722 = vmul.f32 %v683, %v696
        %v723 = vmul.f32 %v684, %v696
        %v724 = vmul.f32 %v685, %v696
        %v725 = vmul.f32 %v686, %v696
        %v726 = vmul.f32 %v687, %v696
        %v727 = vmul.f32 %v688, %v696
        %v728 = vmul.f32 %v689, %v696
        %v729 = vmul.f32 %v690, %v696
        %vm730 = vcmask 261120
        %v731 = vsel %vm730, %v698, 0.0
        %732 = vadd.xlane.f32.xlu0 %v731
        %v733 = vpop.xlane.xlu0 %732
        %v734 = vsel %vm730, %v699, 0.0
        %735 = vadd.xlane.f32.xlu0 %v734
        %v736 = vpop.xlane.xlu0 %735
        %v737 = vsel %vm730, %v700, 0.0
        %738 = vadd.xlane.f32.xlu0 %v737
        %v739 = vpop.xlane.xlu0 %738
        %v740 = vsel %vm730, %v701, 0.0
        %741 = vadd.xlane.f32.xlu0 %v740
        %v742 = vpop.xlane.xlu0 %741
        %v743 = vsel %vm730, %v702, 0.0
        %744 = vadd.xlane.f32.xlu0 %v743
        %v745 = vpop.xlane.xlu0 %744
        %v746 = vsel %vm730, %v703, 0.0
        %747 = vadd.xlane.f32.xlu0 %v746
        %v748 = vpop.xlane.xlu0 %747
        %v749 = vsel %vm730, %v704, 0.0
        %750 = vadd.xlane.f32.xlu0 %v749
        %v751 = vpop.xlane.xlu0 %750
        %v752 = vsel %vm730, %v705, 0.0
        %753 = vadd.xlane.f32.xlu0 %v752
        %v754 = vpop.xlane.xlu0 %753
        %v755 = vsel %vm730, %v706, 0.0
        %756 = vadd.xlane.f32.xlu0 %v755
        %v757 = vpop.xlane.xlu0 %756
        %v758 = vsel %vm730, %v707, 0.0
        %759 = vadd.xlane.f32.xlu0 %v758
        %v760 = vpop.xlane.xlu0 %759
        %v761 = vsel %vm730, %v708, 0.0
        %762 = vadd.xlane.f32.xlu0 %v761
        %v763 = vpop.xlane.xlu0 %762
        %v764 = vsel %vm730, %v709, 0.0
        %765 = vadd.xlane.f32.xlu0 %v764
        %v766 = vpop.xlane.xlu0 %765
        %v767 = vsel %vm730, %v710, 0.0
        %768 = vadd.xlane.f32.xlu0 %v767
        %v769 = vpop.xlane.xlu0 %768
        %v770 = vsel %vm730, %v711, 0.0
        %771 = vadd.xlane.f32.xlu0 %v770
        %v772 = vpop.xlane.xlu0 %771
        %v773 = vsel %vm730, %v712, 0.0
        %774 = vadd.xlane.f32.xlu0 %v773
        %v775 = vpop.xlane.xlu0 %774
        %v776 = vsel %vm730, %v713, 0.0
        %777 = vadd.xlane.f32.xlu0 %v776
        %v778 = vpop.xlane.xlu0 %777
        %v779 = vsel %vm730, %v714, 0.0
        %780 = vadd.xlane.f32.xlu0 %v779
        %v781 = vpop.xlane.xlu0 %780
        %v782 = vsel %vm730, %v715, 0.0
        %783 = vadd.xlane.f32.xlu0 %v782
        %v784 = vpop.xlane.xlu0 %783
        %v785 = vsel %vm730, %v716, 0.0
        %786 = vadd.xlane.f32.xlu0 %v785
        %v787 = vpop.xlane.xlu0 %786
        %v788 = vsel %vm730, %v717, 0.0
        %789 = vadd.xlane.f32.xlu0 %v788
        %v790 = vpop.xlane.xlu0 %789
        %v791 = vsel %vm730, %v718, 0.0
        %792 = vadd.xlane.f32.xlu0 %v791
        %v793 = vpop.xlane.xlu0 %792
        %v794 = vsel %vm730, %v719, 0.0
        %795 = vadd.xlane.f32.xlu0 %v794
        %v796 = vpop.xlane.xlu0 %795
        %v797 = vsel %vm730, %v720, 0.0
        %798 = vadd.xlane.f32.xlu0 %v797
        %v799 = vpop.xlane.xlu0 %798
        %v800 = vsel %vm730, %v721, 0.0
        %801 = vadd.xlane.f32.xlu0 %v800
        %v802 = vpop.xlane.xlu0 %801
        %v803 = vsel %vm730, %v722, 0.0
        %804 = vadd.xlane.f32.xlu0 %v803
        %v805 = vpop.xlane.xlu0 %804
        %v806 = vsel %vm730, %v723, 0.0
        %807 = vadd.xlane.f32.xlu0 %v806
        %v808 = vpop.xlane.xlu0 %807
        %v809 = vsel %vm730, %v724, 0.0
        %810 = vadd.xlane.f32.xlu0 %v809
        %v811 = vpop.xlane.xlu0 %810
        %v812 = vsel %vm730, %v725, 0.0
        %813 = vadd.xlane.f32.xlu0 %v812
        %v814 = vpop.xlane.xlu0 %813
        %v815 = vsel %vm730, %v726, 0.0
        %816 = vadd.xlane.f32.xlu0 %v815
        %v817 = vpop.xlane.xlu0 %816
        %v818 = vsel %vm730, %v727, 0.0
        %819 = vadd.xlane.f32.xlu0 %v818
        %v820 = vpop.xlane.xlu0 %819
        %v821 = vsel %vm730, %v728, 0.0
        %822 = vadd.xlane.f32.xlu0 %v821
        %v823 = vpop.xlane.xlu0 %822
        %v824 = vsel %vm730, %v729, 0.0
        %825 = vadd.xlane.f32.xlu0 %v824
        %v826 = vpop.xlane.xlu0 %825
        %v827 = vld [vmem:[#allocation3] sm:$0xff]
        %v828 = vmax.f32 %v733, %v745
        %v829 = vmax.f32 %v736, %v748
        %v830 = vmax.f32 %v739, %v751
        %v831 = vmax.f32 %v742, %v754
        %v832 = vmax.f32 %v828, %v757
        %v833 = vmax.f32 %v829, %v760
        %v834 = vmax.f32 %v830, %v763
        %v835 = vmax.f32 %v831, %v766
        %v836 = vmax.f32 %v832, %v769
        %v837 = vmax.f32 %v833, %v772
        %v838 = vmax.f32 %v834, %v775
        %v839 = vmax.f32 %v835, %v778
        %v840 = vmax.f32 %v836, %v781
        %v841 = vmax.f32 %v837, %v784
        %v842 = vmax.f32 %v838, %v787
        %v843 = vmax.f32 %v839, %v790
        %v844 = vmax.f32 %v840, %v793
        %v845 = vmax.f32 %v841, %v796
        %v846 = vmax.f32 %v842, %v799
        %v847 = vmax.f32 %v843, %v802
        %v848 = vmax.f32 %v844, %v805
        %v849 = vmax.f32 %v845, %v808
        %v850 = vmax.f32 %v846, %v811
        %v851 = vmax.f32 %v847, %v814
        %v852 = vmax.f32 %v848, %v817
        %v853 = vmax.f32 %v849, %v820
        %v854 = vmax.f32 %v850, %v823
        %v855 = vmax.f32 %v851, %v826
        %v856 = vmax.f32 %v852, %v853
        %v857 = vmax.f32 %v854, %v855
        %v858 = vmax.f32 %v856, %v857
        %v859 = vmax.f32 %v827, %v858
        %v860 = vsub.f32 %v827, %v859
        %v861 = vmul.f32 %v860, 1.442695
        %v862 = vpow.pop %v861
        %v863 = vsub.f32 %v733, %v859
        %v864 = vsub.f32 %v736, %v859
        %v865 = vsub.f32 %v739, %v859
        %v866 = vsub.f32 %v742, %v859
        %v867 = vsub.f32 %v745, %v859
        %v868 = vsub.f32 %v748, %v859
        %v869 = vsub.f32 %v751, %v859
        %v870 = vsub.f32 %v754, %v859
        %v871 = vsub.f32 %v757, %v859
        %v872 = vsub.f32 %v760, %v859
        %v873 = vsub.f32 %v763, %v859
        %v874 = vsub.f32 %v766, %v859
        %v875 = vsub.f32 %v769, %v859
        %v876 = vsub.f32 %v772, %v859
        %v877 = vsub.f32 %v775, %v859
        %v878 = vsub.f32 %v778, %v859
        %v879 = vsub.f32 %v781, %v859
        %v880 = vsub.f32 %v784, %v859
        %v881 = vsub.f32 %v787, %v859
        %v882 = vsub.f32 %v790, %v859
        %v883 = vsub.f32 %v793, %v859
        %v884 = vsub.f32 %v796, %v859
        %v885 = vsub.f32 %v799, %v859
        %v886 = vsub.f32 %v802, %v859
        %v887 = vsub.f32 %v805, %v859
        %v888 = vsub.f32 %v808, %v859
        %v889 = vsub.f32 %v811, %v859
        %v890 = vsub.f32 %v814, %v859
        %v891 = vsub.f32 %v817, %v859
        %v892 = vsub.f32 %v820, %v859
        %v893 = vsub.f32 %v823, %v859
        %v894 = vsub.f32 %v826, %v859
        %v895 = vmul.f32 %v863, 1.442695
        %v896 = vpow.pop %v895
        %v897 = vmul.f32 %v864, 1.442695
        %v898 = vpow.pop %v897
        %v899 = vmul.f32 %v865, 1.442695
        %v900 = vpow.pop %v899
        %v901 = vmul.f32 %v866, 1.442695
        %v902 = vpow.pop %v901
        %v903 = vmul.f32 %v867, 1.442695
        %v904 = vpow.pop %v903
        %v905 = vmul.f32 %v868, 1.442695
        %v906 = vpow.pop %v905
        %v907 = vmul.f32 %v869, 1.442695
        %v908 = vpow.pop %v907
        %v909 = vmul.f32 %v870, 1.442695
        %v910 = vpow.pop %v909
        %v911 = vmul.f32 %v871, 1.442695
        %v912 = vpow.pop %v911
        %v913 = vmul.f32 %v872, 1.442695
        %v914 = vpow.pop %v913
        %v915 = vmul.f32 %v873, 1.442695
        %v916 = vpow.pop %v915
        %v917 = vmul.f32 %v874, 1.442695
        %v918 = vpow.pop %v917
        %v919 = vmul.f32 %v875, 1.442695
        %v920 = vpow.pop %v919
        %v921 = vmul.f32 %v876, 1.442695
        %v922 = vpow.pop %v921
        %v923 = vmul.f32 %v877, 1.442695
        %v924 = vpow.pop %v923
        %v925 = vmul.f32 %v878, 1.442695
        %v926 = vpow.pop %v925
        %v927 = vmul.f32 %v879, 1.442695
        %v928 = vpow.pop %v927
        %v929 = vmul.f32 %v880, 1.442695
        %v930 = vpow.pop %v929
        %v931 = vmul.f32 %v881, 1.442695
        %v932 = vpow.pop %v931
        %v933 = vmul.f32 %v882, 1.442695
        %v934 = vpow.pop %v933
        %v935 = vmul.f32 %v883, 1.442695
        %v936 = vpow.pop %v935
        %v937 = vmul.f32 %v884, 1.442695
        %v938 = vpow.pop %v937
        %v939 = vmul.f32 %v885, 1.442695
        %v940 = vpow.pop %v939
        %v941 = vmul.f32 %v886, 1.442695
        %v942 = vpow.pop %v941
        %v943 = vmul.f32 %v887, 1.442695
        %v944 = vpow.pop %v943
        %v945 = vmul.f32 %v888, 1.442695
        %v946 = vpow.pop %v945
        %v947 = vmul.f32 %v889, 1.442695
        %v948 = vpow.pop %v947
        %v949 = vmul.f32 %v890, 1.442695
        %v950 = vpow.pop %v949
        %v951 = vmul.f32 %v891, 1.442695
        %v952 = vpow.pop %v951
        %v953 = vmul.f32 %v892, 1.442695
        %v954 = vpow.pop %v953
        %v955 = vmul.f32 %v893, 1.442695
        %v956 = vpow.pop %v955
        %v957 = vmul.f32 %v894, 1.442695
        %v958 = vpow.pop %v957
        %v959 = vld [vmem:[#allocation4] sm:$0xff]
        %v960 = vmul.f32 %v862, %v959
        %vm961 = vcmask 7168
        %v962 = vsel %vm961, %v896, 0.0
        %v963 = vsel %vm961, %v898, 0.0
        %v964 = vadd.f32 %v962, %v963
        %v965 = vsel %vm961, %v900, 0.0
        %v966 = vadd.f32 %v964, %v965
        %v967 = vsel %vm961, %v902, 0.0
        %v968 = vadd.f32 %v966, %v967
        %v969 = vsel %vm961, %v904, 0.0
        %v970 = vadd.f32 %v968, %v969
        %v971 = vsel %vm961, %v906, 0.0
        %v972 = vadd.f32 %v970, %v971
        %v973 = vsel %vm961, %v908, 0.0
        %v974 = vadd.f32 %v972, %v973
        %v975 = vsel %vm961, %v910, 0.0
        %v976 = vadd.f32 %v974, %v975
        %v977 = vsel %vm961, %v912, 0.0
        %v978 = vadd.f32 %v976, %v977
        %v979 = vsel %vm961, %v914, 0.0
        %v980 = vadd.f32 %v978, %v979
        %v981 = vsel %vm961, %v916, 0.0
        %v982 = vadd.f32 %v980, %v981
        %v983 = vsel %vm961, %v918, 0.0
        %v984 = vadd.f32 %v982, %v983
        %v985 = vsel %vm961, %v920, 0.0
        %v986 = vadd.f32 %v984, %v985
        %v987 = vsel %vm961, %v922, 0.0
        %v988 = vadd.f32 %v986, %v987
        %v989 = vsel %vm961, %v924, 0.0
        %v990 = vadd.f32 %v988, %v989
        %v991 = vsel %vm961, %v926, 0.0
        %v992 = vadd.f32 %v990, %v991
        %v993 = vsel %vm961, %v928, 0.0
        %v994 = vadd.f32 %v992, %v993
        %v995 = vsel %vm961, %v930, 0.0
        %v996 = vadd.f32 %v994, %v995
        %v997 = vsel %vm961, %v932, 0.0
        %v998 = vadd.f32 %v996, %v997
        %v999 = vsel %vm961, %v934, 0.0
        %v1000 = vadd.f32 %v998, %v999
        %v1001 = vsel %vm961, %v936, 0.0
        %v1002 = vadd.f32 %v1000, %v1001
        %v1003 = vsel %vm961, %v938, 0.0
        %v1004 = vadd.f32 %v1002, %v1003
        %v1005 = vsel %vm961, %v940, 0.0
        %v1006 = vadd.f32 %v1004, %v1005
        %v1007 = vsel %vm961, %v942, 0.0
        %v1008 = vadd.f32 %v1006, %v1007
        %v1009 = vsel %vm961, %v944, 0.0
        %v1010 = vadd.f32 %v1008, %v1009
        %v1011 = vsel %vm961, %v946, 0.0
        %v1012 = vadd.f32 %v1010, %v1011
        %v1013 = vsel %vm961, %v948, 0.0
        %v1014 = vadd.f32 %v1012, %v1013
        %v1015 = vsel %vm961, %v950, 0.0
        %v1016 = vadd.f32 %v1014, %v1015
        %v1017 = vsel %vm961, %v952, 0.0
        %v1018 = vadd.f32 %v1016, %v1017
        %v1019 = vsel %vm961, %v954, 0.0
        %v1020 = vadd.f32 %v1018, %v1019
        %v1021 = vsel %vm961, %v956, 0.0
        %v1022 = vadd.f32 %v1020, %v1021
        %v1023 = vsel %vm961, %v958, 0.0
        %v1024 = vadd.f32 %v1022, %v1023
        %v1025 = vadd.f32 %v960, %v1024
        %1026 = vst.msk [vmem:[#allocation4] sm:$0xff] %vm961, %v1025
        %v1027 = vld [vmem:[#allocation5] sm:$0xff]
        %1029 = vset.pattern.permute.xlu0 0
        %1030 = vperm.xlu0 %1029, %v862
        %v1031 = vpop.permute.xlu0 %1030
        %v1033 = vmul.f32 %v1031, %v1027
        %1035 = vset.pattern.permute.xlu0 0
        %1036 = vperm.xlu0 %1035, %v896
        %v1037 = vpop.permute.xlu0 %1036
        %1040 = vset.pattern.permute.xlu0 0
        %1041 = vperm.xlu0 %1040, %v898
        %v1042 = vpop.permute.xlu0 %1041
        %1045 = vset.pattern.permute.xlu0 0
        %1046 = vperm.xlu0 %1045, %v900
        %v1047 = vpop.permute.xlu0 %1046
        %1050 = vset.pattern.permute.xlu0 0
        %1051 = vperm.xlu0 %1050, %v902
        %v1052 = vpop.permute.xlu0 %1051
        %1055 = vset.pattern.permute.xlu0 0
        %1056 = vperm.xlu0 %1055, %v904
        %v1057 = vpop.permute.xlu0 %1056
        %1060 = vset.pattern.permute.xlu0 0
        %1061 = vperm.xlu0 %1060, %v906
        %v1062 = vpop.permute.xlu0 %1061
        %1065 = vset.pattern.permute.xlu0 0
        %1066 = vperm.xlu0 %1065, %v908
        %v1067 = vpop.permute.xlu0 %1066
        %1070 = vset.pattern.permute.xlu0 0
        %1071 = vperm.xlu0 %1070, %v910
        %v1072 = vpop.permute.xlu0 %1071
        %1075 = vset.pattern.permute.xlu0 0
        %1076 = vperm.xlu0 %1075, %v912
        %v1077 = vpop.permute.xlu0 %1076
        %1080 = vset.pattern.permute.xlu0 0
        %1081 = vperm.xlu0 %1080, %v914
        %v1082 = vpop.permute.xlu0 %1081
        %1085 = vset.pattern.permute.xlu0 0
        %1086 = vperm.xlu0 %1085, %v916
        %v1087 = vpop.permute.xlu0 %1086
        %1090 = vset.pattern.permute.xlu0 0
        %1091 = vperm.xlu0 %1090, %v918
        %v1092 = vpop.permute.xlu0 %1091
        %1095 = vset.pattern.permute.xlu0 0
        %1096 = vperm.xlu0 %1095, %v920
        %v1097 = vpop.permute.xlu0 %1096
        %1100 = vset.pattern.permute.xlu0 0
        %1101 = vperm.xlu0 %1100, %v922
        %v1102 = vpop.permute.xlu0 %1101
        %1105 = vset.pattern.permute.xlu0 0
        %1106 = vperm.xlu0 %1105, %v924
        %v1107 = vpop.permute.xlu0 %1106
        %1110 = vset.pattern.permute.xlu0 0
        %1111 = vperm.xlu0 %1110, %v926
        %v1112 = vpop.permute.xlu0 %1111
        %1115 = vset.pattern.permute.xlu0 0
        %1116 = vperm.xlu0 %1115, %v928
        %v1117 = vpop.permute.xlu0 %1116
        %1120 = vset.pattern.permute.xlu0 0
        %1121 = vperm.xlu0 %1120, %v930
        %v1122 = vpop.permute.xlu0 %1121
        %1125 = vset.pattern.permute.xlu0 0
        %1126 = vperm.xlu0 %1125, %v932
        %v1127 = vpop.permute.xlu0 %1126
        %1130 = vset.pattern.permute.xlu0 0
        %1131 = vperm.xlu0 %1130, %v934
        %v1132 = vpop.permute.xlu0 %1131
        %1135 = vset.pattern.permute.xlu0 0
        %1136 = vperm.xlu0 %1135, %v936
        %v1137 = vpop.permute.xlu0 %1136
        %1140 = vset.pattern.permute.xlu0 0
        %1141 = vperm.xlu0 %1140, %v938
        %v1142 = vpop.permute.xlu0 %1141
        %1145 = vset.pattern.permute.xlu0 0
        %1146 = vperm.xlu0 %1145, %v940
        %v1147 = vpop.permute.xlu0 %1146
        %1150 = vset.pattern.permute.xlu0 0
        %1151 = vperm.xlu0 %1150, %v942
        %v1152 = vpop.permute.xlu0 %1151
        %1155 = vset.pattern.permute.xlu0 0
        %1156 = vperm.xlu0 %1155, %v944
        %v1157 = vpop.permute.xlu0 %1156
        %1160 = vset.pattern.permute.xlu0 0
        %1161 = vperm.xlu0 %1160, %v946
        %v1162 = vpop.permute.xlu0 %1161
        %1165 = vset.pattern.permute.xlu0 0
        %1166 = vperm.xlu0 %1165, %v948
        %v1167 = vpop.permute.xlu0 %1166
        %1170 = vset.pattern.permute.xlu0 0
        %1171 = vperm.xlu0 %1170, %v950
        %v1172 = vpop.permute.xlu0 %1171
        %1175 = vset.pattern.permute.xlu0 0
        %1176 = vperm.xlu0 %1175, %v952
        %v1177 = vpop.permute.xlu0 %1176
        %1180 = vset.pattern.permute.xlu0 0
        %1181 = vperm.xlu0 %1180, %v954
        %v1182 = vpop.permute.xlu0 %1181
        %1185 = vset.pattern.permute.xlu0 0
        %1186 = vperm.xlu0 %1185, %v956
        %v1187 = vpop.permute.xlu0 %1186
        %1190 = vset.pattern.permute.xlu0 0
        %1191 = vperm.xlu0 %1190, %v958
        %v1192 = vpop.permute.xlu0 %1191
        %v1194 = vmul.f32 %v1037, %v594
        %v1195 = vmul.f32 %v1042, %v595
        %v1196 = vmul.f32 %v1047, %v596
        %v1197 = vmul.f32 %v1052, %v597
        %v1198 = vmul.f32 %v1057, %v598
        %v1199 = vmul.f32 %v1062, %v599
        %v1200 = vmul.f32 %v1067, %v600
        %v1201 = vmul.f32 %v1072, %v601
        %v1202 = vmul.f32 %v1077, %v602
        %v1203 = vmul.f32 %v1082, %v603
        %v1204 = vmul.f32 %v1087, %v604
        %v1205 = vmul.f32 %v1092, %v605
        %v1206 = vmul.f32 %v1097, %v606
        %v1207 = vmul.f32 %v1102, %v607
        %v1208 = vmul.f32 %v1107, %v608
        %v1209 = vmul.f32 %v1112, %v609
        %v1210 = vmul.f32 %v1117, %v610
        %v1211 = vmul.f32 %v1122, %v611
        %v1212 = vmul.f32 %v1127, %v612
        %v1213 = vmul.f32 %v1132, %v613
        %v1214 = vmul.f32 %v1137, %v614
        %v1215 = vmul.f32 %v1142, %v615
        %v1216 = vmul.f32 %v1147, %v616
        %v1217 = vmul.f32 %v1152, %v617
        %v1218 = vmul.f32 %v1157, %v618
        %v1219 = vmul.f32 %v1162, %v619
        %v1220 = vmul.f32 %v1167, %v620
        %v1221 = vmul.f32 %v1172, %v621
        %v1222 = vmul.f32 %v1177, %v622
        %v1223 = vmul.f32 %v1182, %v623
        %v1224 = vmul.f32 %v1187, %v624
        %v1225 = vmul.f32 %v1192, %v625
        %v1226 = vsel %vm730, %v1194, 0.0
        %v1227 = vsel %vm730, %v1195, 0.0
        %v1228 = vadd.f32 %v1226, %v1227
        %v1229 = vsel %vm730, %v1196, 0.0
        %v1230 = vadd.f32 %v1228, %v1229
        %v1231 = vsel %vm730, %v1197, 0.0
        %v1232 = vadd.f32 %v1230, %v1231
        %v1233 = vsel %vm730, %v1198, 0.0
        %v1234 = vadd.f32 %v1232, %v1233
        %v1235 = vsel %vm730, %v1199, 0.0
        %v1236 = vadd.f32 %v1234, %v1235
        %v1237 = vsel %vm730, %v1200, 0.0
        %v1238 = vadd.f32 %v1236, %v1237
        %v1239 = vsel %vm730, %v1201, 0.0
        %v1240 = vadd.f32 %v1238, %v1239
        %v1241 = vsel %vm730, %v1202, 0.0
        %v1242 = vadd.f32 %v1240, %v1241
        %v1243 = vsel %vm730, %v1203, 0.0
        %v1244 = vadd.f32 %v1242, %v1243
        %v1245 = vsel %vm730, %v1204, 0.0
        %v1246 = vadd.f32 %v1244, %v1245
        %v1247 = vsel %vm730, %v1205, 0.0
        %v1248 = vadd.f32 %v1246, %v1247
        %v1249 = vsel %vm730, %v1206, 0.0
        %v1250 = vadd.f32 %v1248, %v1249
        %v1251 = vsel %vm730, %v1207, 0.0
        %v1252 = vadd.f32 %v1250, %v1251
        %v1253 = vsel %vm730, %v1208, 0.0
        %v1254 = vadd.f32 %v1252, %v1253
        %v1255 = vsel %vm730, %v1209, 0.0
        %v1256 = vadd.f32 %v1254, %v1255
        %v1257 = vsel %vm730, %v1210, 0.0
        %v1258 = vadd.f32 %v1256, %v1257
        %v1259 = vsel %vm730, %v1211, 0.0
        %v1260 = vadd.f32 %v1258, %v1259
        %v1261 = vsel %vm730, %v1212, 0.0
        %v1262 = vadd.f32 %v1260, %v1261
        %v1263 = vsel %vm730, %v1213, 0.0
        %v1264 = vadd.f32 %v1262, %v1263
        %v1265 = vsel %vm730, %v1214, 0.0
        %v1266 = vadd.f32 %v1264, %v1265
        %v1267 = vsel %vm730, %v1215, 0.0
        %v1268 = vadd.f32 %v1266, %v1267
        %v1269 = vsel %vm730, %v1216, 0.0
        %v1270 = vadd.f32 %v1268, %v1269
        %v1271 = vsel %vm730, %v1217, 0.0
        %v1272 = vadd.f32 %v1270, %v1271
        %v1273 = vsel %vm730, %v1218, 0.0
        %v1274 = vadd.f32 %v1272, %v1273
        %v1275 = vsel %vm730, %v1219, 0.0
        %v1276 = vadd.f32 %v1274, %v1275
        %v1277 = vsel %vm730, %v1220, 0.0
        %v1278 = vadd.f32 %v1276, %v1277
        %v1279 = vsel %vm730, %v1221, 0.0
        %v1280 = vadd.f32 %v1278, %v1279
        %v1281 = vsel %vm730, %v1222, 0.0
        %v1282 = vadd.f32 %v1280, %v1281
        %v1283 = vsel %vm730, %v1223, 0.0
        %v1284 = vadd.f32 %v1282, %v1283
        %v1285 = vsel %vm730, %v1224, 0.0
        %v1286 = vadd.f32 %v1284, %v1285
        %v1287 = vsel %vm730, %v1225, 0.0
        %v1288 = vadd.f32 %v1286, %v1287
        %v1289 = vadd.f32 %v1033, %v1288
        %1290 = vst.msk [vmem:[#allocation5] sm:$0xff] %vm730, %v1289
        %1291 = vst.msk [vmem:[#allocation3] sm:$0xff] %vm961, %v859
        // Predicated region
        $region69: #{tpu_custom_call.1} parent=47 // pred_check
          %p1292 = pneg %p380
        $region70: #{tpu_custom_call.1} parent=47 // pred_check_branch
          %1294 = sbr.rel (%p1292) target = $region72
        $region71: #{tpu_custom_call.1} parent=47 // pred_region
          %v1295 = vld [vmem:[#allocation5] sm:$0xff]
          %v1296 = vld [vmem:[#allocation4] sm:$0xff]
          %v1297 = vrcp.pop %v1296
          %1299 = vset.pattern.permute.xlu0 0
          %1300 = vperm.xlu0 %1299, %v1297
          %v1301 = vpop.permute.xlu0 %1300
          %v1303 = vmul.f32 %v1295, %v1301
          %1305 = vrot.lane.b32.xlu0 %v1303, 32
          %v1306 = vpop.permute.xlu0 %1305
          %vm1308 = vcmask 523520
          %1309 = vst.msk [vmem:[%s378] sm:$0xff] %vm1308, %v1306
        $region72: #{tpu_custom_call.1} parent=47 // pred_fallthru
          _
        %s1310 = sand.u32 %s207, 1
        %s1311 = scalar_lea.sflag [#allocation8], %s1310
        %s1312 = sand.u32 %s207, 1
        %s1313 = smul.addr %s1312, 8
        %s1314 = scalar_lea.vmem [#allocation14], %s1313
        // Predicated region
        $region73: #{tpu_custom_call.1} parent=47 // pred_check
          %p1315 = pneg %p217
        $region74: #{tpu_custom_call.1} parent=47 // pred_check_branch
          %1317 = sbr.rel (%p1315) target = $region76
        $region75: #{tpu_custom_call.1} parent=47 // pred_region
          %s1319 = ssub.s32 128, 128
          %1320 = vsyncadd %s1311, %s1319
          %s1321 = smul.addr %s32, 128
          %s1322 = scalar_lea.hbm %s7, %s1321
          %s1324 = sshll.u32 %s1314, 4
          %s1325 = int_to_ptr.vmem [resolvable:$true] %s1324
          %1327 = dma.vmem_to_hbm [thread:$0]  %s1325, 128, %s1322, %s1311
        $region76: #{tpu_custom_call.1} parent=47 // pred_fallthru
          _
      $region48: #{tpu_custom_call.1} parent=5 // pred_fallthru
        _
      %p1328 = scmp.le.s32.totalorder 2, %s23
      // Predicated region
      $region77: #{tpu_custom_call.1} parent=5 // pred_check
        %p1329 = pneg %p1328
      $region78: #{tpu_custom_call.1} parent=5 // pred_check_branch
        %1331 = sbr.rel (%p1329) target = $region80
      $region79: #{tpu_custom_call.1} parent=5 // pred_region
        %s1332 = ssub.s32 %s23, 2
        // Predicated region
        $region81: #{tpu_custom_call.1} parent=79 // pred_check
          %p1333 = pneg %p223
        $region82: #{tpu_custom_call.1} parent=79 // pred_check_branch
          %1335 = sbr.rel (%p1333) target = $region84
        $region83: #{tpu_custom_call.1} parent=79 // pred_region
          %s1336 = sand.u32 %s208, 1
          %s1337 = scalar_lea.sflag [#allocation8], %s1336
          %s1338 = sand.u32 %s208, 1
          %s1339 = smul.addr %s1338, 8
          %s1340 = scalar_lea.vmem [#allocation14], %s1339
          %1341 = dma.done %s1337, 128
        $region84: #{tpu_custom_call.1} parent=79 // pred_fallthru
          _
      $region80: #{tpu_custom_call.1} parent=5 // pred_fallthru
        _
    $region6: #{tpu_custom_call.1} parent=1 // loop_footer
      %s27 = sadd.s32 1, %s23
    $region7: #{tpu_custom_call.1} parent=1 // loop_footer_branch
      %22 = sbr.rel target = $region3
    $region8: #{tpu_custom_call.1} parent=1 // loop_exit
      _
    %1342 = vsyncpa [#allocation7], 1
    %s1343 = scalar_lea.sflag [#allocation7], 1
    %1344 = vsyncpa %s1343, 1
    %1345 = vsyncpa [#allocation10], 1
    %s1346 = scalar_lea.sflag [#allocation10], 1
    %1347 = vsyncpa %s1346, 1
    %1348 = vsyncpa [#allocation13], 1
    %1349 = vsyncpa [#allocation8], 1
    %s1350 = scalar_lea.sflag [#allocation8], 1
    %1351 = vsyncpa %s1350, 1

</llo_original>
